<compile_context>
chip_gen: v7x
topology: tpu7x:2x2x1
jax: 0.10.0
libtpu: 0.0.40
codegen_flags: <defaults>
</compile_context>

<pallas_src>
import functools

import jax
import jax.numpy as jnp
from jax.experimental import pallas as pl
from jax.experimental.pallas import tpu as pltpu

GROUPS = 4
COMPUTE_DTYPE = jnp.bfloat16   # MXU operand dtype; accumulation stays f32


# ----------------------------------------------------------------------------
# In-kernel helpers (operate on (C, T) values, channels on sublanes, T on lanes)
# ----------------------------------------------------------------------------
def _grouped_causal_conv(x, w_ref, b_ref, *, dilation, ksize, groups):
    """Causal dilated grouped conv.

    x:     (Cin, T) f32
    w_ref: (G, Cout_g, K*Cin_g)  bf16, taps stacked along contraction axis
    b_ref: (Cout, 1) f32
    returns (Cout, T) f32
    """
    cin, T = x.shape
    cin_g = cin // groups
    pad = (ksize - 1) * dilation

    # Left-pad the time axis once (causal); taps become static slices.
    if pad > 0:
        xp = jnp.concatenate([jnp.zeros((cin, pad), x.dtype), x], axis=1)
    else:
        xp = x

    outs = []
    for g in range(groups):                       # unrolled at trace time
        xg = xp[g * cin_g:(g + 1) * cin_g, :]     # (Cin_g, T+pad)
        if ksize > 1:
            # Stack the K shifted views along the contraction axis so the
            # whole tap sum is ONE MXU matmul per group.
            xs = jnp.concatenate(
                [xg[:, k * dilation:k * dilation + T] for k in range(ksize)],
                axis=0)                           # (K*Cin_g, T)
        else:
            xs = xg[:, :T]
        outs.append(jnp.dot(w_ref[g], xs.astype(w_ref.dtype),
                            preferred_element_type=jnp.float32))
    # bias add is fused with the caller's ReLU in a single VPU pass
    return jnp.concatenate(outs, axis=0) + b_ref[...]      # (Cout, T) f32


def _make_tcn_kernel(layer_cfgs, ksize, groups):
    """layer_cfgs: tuple of (cin, cout, dilation, has_downsample) — static."""

    def kernel(*refs):
        x_ref, out_ref = refs[0], refs[-1]
        wrefs = refs[1:-1]

        x = x_ref[0]                              # (Cin0, T) f32
        wi = 0
        for (cin, cout, dilation, has_down) in layer_cfgs:
            w1, b1, w2, b2 = wrefs[wi:wi + 4]
            wi += 4
            # conv1 -> chomp -> ReLU (dropout == identity in eval mode)
            h1 = jnp.maximum(
                _grouped_causal_conv(x, w1, b1, dilation=dilation,
                                     ksize=ksize, groups=groups), 0.0)
            # conv2 -> chomp -> ReLU
            h2 = jnp.maximum(
                _grouped_causal_conv(h1, w2, b2, dilation=dilation,
                                     ksize=ksize, groups=groups), 0.0)
            # residual path: identity or 1x1 dense conv (no ReLU)
            if has_down:
                wd, bd = wrefs[wi:wi + 2]
                wi += 2
                res = jnp.dot(wd[...], x.astype(wd.dtype),
                              preferred_element_type=jnp.float32) + bd[...]
            else:
                res = x
            x = jnp.maximum(h2 + res, 0.0)

        out_ref[0] = x.astype(out_ref.dtype)

    return kernel


# ----------------------------------------------------------------------------
# Host-side wrapper: one pallas_call for the whole network
# ----------------------------------------------------------------------------
def tcn_forward(x, params, *, kernel_size, groups=GROUPS):
    """x: (B, Cin, T) in PyTorch NCW layout.  Returns (B, Cout_last, T)."""
    B, cin0, T = x.shape

    layer_cfgs = []
    flat_args = []
    flops = 0
    cin = cin0
    for i, p in enumerate(params):
        dilation = 2 ** i
        cout = p["b1"].shape[0]
        has_down = p["wd"] is not None
        layer_cfgs.append((cin, cout, dilation, has_down))
        flat_args += [p["w1"].astype(COMPUTE_DTYPE), p["b1"],
                      p["w2"].astype(COMPUTE_DTYPE), p["b2"]]
        if has_down:
            flat_args += [p["wd"].astype(COMPUTE_DTYPE), p["bd"]]
        flops += 2 * B * T * kernel_size * cin * cout // groups    # conv1
        flops += 2 * B * T * kernel_size * cout * cout // groups   # conv2
        if has_down:
            flops += 2 * B * T * cin * cout                        # 1x1 conv
        cin = cout
    cout_last = cin

    in_specs = [pl.BlockSpec((1, cin0, T), lambda b: (b, 0, 0))]
    for w in flat_args:
        # full-array blocks, constant index map -> weights stay VMEM-resident
        in_specs.append(pl.BlockSpec(w.shape, lambda b, n=w.ndim: (0,) * n))

    bytes_accessed = (x.size * x.dtype.itemsize
                      + sum(w.size * w.dtype.itemsize for w in flat_args)
                      + B * cout_last * T * x.dtype.itemsize)

    kernel = _make_tcn_kernel(tuple(layer_cfgs), kernel_size, groups)
    return pl.pallas_call(
        kernel,
        out_shape=jax.ShapeDtypeStruct((B, cout_last, T), x.dtype),
        grid=(B,),
        in_specs=in_specs,
        out_specs=pl.BlockSpec((1, cout_last, T), lambda b: (b, 0, 0)),
        compiler_params=pltpu.CompilerParams(
            dimension_semantics=("parallel",)),
        cost_estimate=pl.CostEstimate(flops=int(flops), transcendentals=0,
                                      bytes_accessed=int(bytes_accessed)),
    )(x, *flat_args)


# ----------------------------------------------------------------------------
# Parameter setup (plain JAX glue; produces kernel-ready stacked weights)
# ----------------------------------------------------------------------------
def _stack_grouped_weight(w, groups):
    """PyTorch grouped Conv1d weight (Cout, Cin/groups, K) ->
    (groups, Cout_g, K*Cin_g), taps stacked along the contraction axis so the
    in-kernel conv is one matmul per group."""
    cout, cin_g, K = w.shape
    cout_g = cout // groups
    w = w.reshape(groups, cout_g, cin_g, K)
    w = jnp.transpose(w, (0, 1, 3, 2))            # (G, Cout_g, K, Cin_g)
    return w.reshape(groups, cout_g, K * cin_g)


def init_params(key, num_inputs, num_channels, kernel_size, groups=GROUPS):
    params = []
    cin = num_inputs
    for cout in num_channels:
        key, k1, k2, k3, k4, k5, k6 = jax.random.split(key, 7)
        w1 = jax.random.normal(k1, (cout, cin // groups, kernel_size),
                               jnp.float32) * 0.01
        b1 = jax.random.normal(k2, (cout,), jnp.float32) * 0.01
        w2 = jax.random.normal(k3, (cout, cout // groups, kernel_size),
                               jnp.float32) * 0.01
        b2 = jax.random.normal(k4, (cout,), jnp.float32) * 0.01
        p = {
            "w1": _stack_grouped_weight(w1, groups), "b1": b1.reshape(cout, 1),
            "w2": _stack_grouped_weight(w2, groups), "b2": b2.reshape(cout, 1),
            "wd": None, "bd": None,
        }
        if cin != cout:
            wd = jax.random.normal(k5, (cout, cin, 1), jnp.float32) * 0.01
            bd = jax.random.normal(k6, (cout,), jnp.float32) * 0.01
            p["wd"] = wd[:, :, 0]                 # (Cout, Cin)
            p["bd"] = bd.reshape(cout, 1)
        params.append(p)
        cin = cout
    return params


# ----------------------------------------------------------------------------
if __name__ == "__main__":
    key = jax.random.PRNGKey(0)
    B, num_inputs, T = 2, 8, 16
    num_channels = [8, 16]   # level 0: 8->8 (identity res), level 1: 8->16 (downsample)
    kernel_size = 2

    kx, kp = jax.random.split(key)
    x = jax.random.normal(kx, (B, num_inputs, T), jnp.float32)   # NCW, like PyTorch
    params = init_params(kp, num_inputs, num_channels, kernel_size)

    fwd = jax.jit(functools.partial(tcn_forward, params=params,
                                    kernel_size=kernel_size))
    y = fwd(x)
    jax.block_until_ready(y)
    assert y.shape == (B, num_channels[-1], T)
    print("KERNEL_OK")
</pallas_src>

<mosaic_0001>
module attributes {stable_mosaic.version = 11 : i64} {
  func.func @kernel(%arg0: i32, %arg1: memref<1x8x16xf32, #tpu.memory_space<vmem>>, %arg2: memref<4x2x4xbf16, #tpu.memory_space<vmem>>, %arg3: memref<8x1xf32, #tpu.memory_space<vmem>>, %arg4: memref<4x2x4xbf16, #tpu.memory_space<vmem>>, %arg5: memref<8x1xf32, #tpu.memory_space<vmem>>, %arg6: memref<4x4x4xbf16, #tpu.memory_space<vmem>>, %arg7: memref<16x1xf32, #tpu.memory_space<vmem>>, %arg8: memref<4x4x8xbf16, #tpu.memory_space<vmem>>, %arg9: memref<16x1xf32, #tpu.memory_space<vmem>>, %arg10: memref<16x8xbf16, #tpu.memory_space<vmem>>, %arg11: memref<16x1xf32, #tpu.memory_space<vmem>>, %arg12: memref<1x16x16xf32, #tpu.memory_space<vmem>>) attributes {dimension_semantics = [#tpu.dimension_semantics<parallel>], iteration_bounds = array<i64: 2>, scalar_prefetch = 0 : i64, scratch_operands = 0 : i64, tpu.core_type = #tpu.core_type<tc>, window_params = [{transform_indices = @transform_0, window_bounds = array<i64: 1, 8, 16>}, {pipeline_mode = #tpu.pipeline_mode<synchronous>, transform_indices = @transform_1, window_bounds = array<i64: 4, 2, 4>}, {pipeline_mode = #tpu.pipeline_mode<synchronous>, transform_indices = @transform_2, window_bounds = array<i64: 8, 1>}, {pipeline_mode = #tpu.pipeline_mode<synchronous>, transform_indices = @transform_3, window_bounds = array<i64: 4, 2, 4>}, {pipeline_mode = #tpu.pipeline_mode<synchronous>, transform_indices = @transform_4, window_bounds = array<i64: 8, 1>}, {pipeline_mode = #tpu.pipeline_mode<synchronous>, transform_indices = @transform_5, window_bounds = array<i64: 4, 4, 4>}, {pipeline_mode = #tpu.pipeline_mode<synchronous>, transform_indices = @transform_6, window_bounds = array<i64: 16, 1>}, {pipeline_mode = #tpu.pipeline_mode<synchronous>, transform_indices = @transform_7, window_bounds = array<i64: 4, 4, 8>}, {pipeline_mode = #tpu.pipeline_mode<synchronous>, transform_indices = @transform_8, window_bounds = array<i64: 16, 1>}, {pipeline_mode = #tpu.pipeline_mode<synchronous>, transform_indices = @transform_9, window_bounds = array<i64: 16, 8>}, {pipeline_mode = #tpu.pipeline_mode<synchronous>, transform_indices = @transform_10, window_bounds = array<i64: 16, 1>}, {transform_indices = @transform_11, window_bounds = array<i64: 1, 16, 16>}]} {
    %c0 = arith.constant 0 : index
    %c0_0 = arith.constant 0 : index
    %c0_1 = arith.constant 0 : index
    %0 = vector.load %arg1[%c0, %c0_0, %c0_1] : memref<1x8x16xf32, #tpu.memory_space<vmem>>, vector<1x8x16xf32>
    %1 = vector.shape_cast %0 : vector<1x8x16xf32> to vector<8x16xf32>
    %cst = arith.constant 0.000000e+00 : f32
    %2 = vector.broadcast %cst : f32 to vector<8x1xf32>
    %3 = tpu.concatenate %2, %1 in 1 : vector<8x1xf32>, vector<8x16xf32> -> vector<8x17xf32>
    %4 = vector.extract_strided_slice %3 {offsets = [0, 0], sizes = [2, 17], strides = [1, 1]} : vector<8x17xf32> to vector<2x17xf32>
    %5 = vector.extract_strided_slice %4 {offsets = [0, 0], sizes = [2, 16], strides = [1, 1]} : vector<2x17xf32> to vector<2x16xf32>
    %6 = vector.extract_strided_slice %4 {offsets = [0, 1], sizes = [2, 16], strides = [1, 1]} : vector<2x17xf32> to vector<2x16xf32>
    %7 = tpu.concatenate %5, %6 in 0 : vector<2x16xf32>, vector<2x16xf32> -> vector<4x16xf32>
    %c0_2 = arith.constant 0 : index
    %c0_3 = arith.constant 0 : index
    %c0_4 = arith.constant 0 : index
    %8 = vector.load %arg2[%c0_2, %c0_3, %c0_4] : memref<4x2x4xbf16, #tpu.memory_space<vmem>>, vector<1x2x4xbf16>
    %9 = vector.shape_cast %8 : vector<1x2x4xbf16> to vector<2x4xbf16>
    %10 = arith.truncf %7 : vector<4x16xf32> to vector<4x16xbf16>
    %cst_5 = arith.constant dense<0.000000e+00> : vector<2x16xf32>
    %11 = tpu.matmul %9, %10, %cst_5 {dimension_numbers = #tpu.dot_dimension_numbers<[1], [0], [0], [1], [0, 0, 1, 1], [], []>} : vector<2x4xbf16>, vector<4x16xbf16>, vector<2x16xf32> -> vector<2x16xf32>
    %12 = vector.extract_strided_slice %3 {offsets = [2, 0], sizes = [2, 17], strides = [1, 1]} : vector<8x17xf32> to vector<2x17xf32>
    %13 = vector.extract_strided_slice %12 {offsets = [0, 0], sizes = [2, 16], strides = [1, 1]} : vector<2x17xf32> to vector<2x16xf32>
    %14 = vector.extract_strided_slice %12 {offsets = [0, 1], sizes = [2, 16], strides = [1, 1]} : vector<2x17xf32> to vector<2x16xf32>
    %15 = tpu.concatenate %13, %14 in 0 : vector<2x16xf32>, vector<2x16xf32> -> vector<4x16xf32>
    %c1 = arith.constant 1 : index
    %c0_6 = arith.constant 0 : index
    %c0_7 = arith.constant 0 : index
    %16 = vector.load %arg2[%c1, %c0_6, %c0_7] : memref<4x2x4xbf16, #tpu.memory_space<vmem>>, vector<1x2x4xbf16>
    %17 = vector.shape_cast %16 : vector<1x2x4xbf16> to vector<2x4xbf16>
    %18 = arith.truncf %15 : vector<4x16xf32> to vector<4x16xbf16>
    %cst_8 = arith.constant dense<0.000000e+00> : vector<2x16xf32>
    %19 = tpu.matmul %17, %18, %cst_8 {dimension_numbers = #tpu.dot_dimension_numbers<[1], [0], [0], [1], [0, 0, 1, 1], [], []>} : vector<2x4xbf16>, vector<4x16xbf16>, vector<2x16xf32> -> vector<2x16xf32>
    %20 = vector.extract_strided_slice %3 {offsets = [4, 0], sizes = [2, 17], strides = [1, 1]} : vector<8x17xf32> to vector<2x17xf32>
    %21 = vector.extract_strided_slice %20 {offsets = [0, 0], sizes = [2, 16], strides = [1, 1]} : vector<2x17xf32> to vector<2x16xf32>
    %22 = vector.extract_strided_slice %20 {offsets = [0, 1], sizes = [2, 16], strides = [1, 1]} : vector<2x17xf32> to vector<2x16xf32>
    %23 = tpu.concatenate %21, %22 in 0 : vector<2x16xf32>, vector<2x16xf32> -> vector<4x16xf32>
    %c2 = arith.constant 2 : index
    %c0_9 = arith.constant 0 : index
    %c0_10 = arith.constant 0 : index
    %24 = vector.load %arg2[%c2, %c0_9, %c0_10] : memref<4x2x4xbf16, #tpu.memory_space<vmem>>, vector<1x2x4xbf16>
    %25 = vector.shape_cast %24 : vector<1x2x4xbf16> to vector<2x4xbf16>
    %26 = arith.truncf %23 : vector<4x16xf32> to vector<4x16xbf16>
    %cst_11 = arith.constant dense<0.000000e+00> : vector<2x16xf32>
    %27 = tpu.matmul %25, %26, %cst_11 {dimension_numbers = #tpu.dot_dimension_numbers<[1], [0], [0], [1], [0, 0, 1, 1], [], []>} : vector<2x4xbf16>, vector<4x16xbf16>, vector<2x16xf32> -> vector<2x16xf32>
    %28 = vector.extract_strided_slice %3 {offsets = [6, 0], sizes = [2, 17], strides = [1, 1]} : vector<8x17xf32> to vector<2x17xf32>
    %29 = vector.extract_strided_slice %28 {offsets = [0, 0], sizes = [2, 16], strides = [1, 1]} : vector<2x17xf32> to vector<2x16xf32>
    %30 = vector.extract_strided_slice %28 {offsets = [0, 1], sizes = [2, 16], strides = [1, 1]} : vector<2x17xf32> to vector<2x16xf32>
    %31 = tpu.concatenate %29, %30 in 0 : vector<2x16xf32>, vector<2x16xf32> -> vector<4x16xf32>
    %c3 = arith.constant 3 : index
    %c0_12 = arith.constant 0 : index
    %c0_13 = arith.constant 0 : index
    %32 = vector.load %arg2[%c3, %c0_12, %c0_13] : memref<4x2x4xbf16, #tpu.memory_space<vmem>>, vector<1x2x4xbf16>
    %33 = vector.shape_cast %32 : vector<1x2x4xbf16> to vector<2x4xbf16>
    %34 = arith.truncf %31 : vector<4x16xf32> to vector<4x16xbf16>
    %cst_14 = arith.constant dense<0.000000e+00> : vector<2x16xf32>
    %35 = tpu.matmul %33, %34, %cst_14 {dimension_numbers = #tpu.dot_dimension_numbers<[1], [0], [0], [1], [0, 0, 1, 1], [], []>} : vector<2x4xbf16>, vector<4x16xbf16>, vector<2x16xf32> -> vector<2x16xf32>
    %36 = tpu.concatenate %11, %19, %27, %35 in 0 : vector<2x16xf32>, vector<2x16xf32>, vector<2x16xf32>, vector<2x16xf32> -> vector<8x16xf32>
    %c0_15 = arith.constant 0 : index
    %c0_16 = arith.constant 0 : index
    %37 = vector.load %arg3[%c0_15, %c0_16] : memref<8x1xf32, #tpu.memory_space<vmem>>, vector<8x1xf32>
    %38 = vector.broadcast %37 : vector<8x1xf32> to vector<8x16xf32>
    %39 = arith.addf %36, %38 : vector<8x16xf32>
    %cst_17 = arith.constant 0.000000e+00 : f32
    %40 = vector.broadcast %cst_17 : f32 to vector<8x16xf32>
    %41 = arith.maximumf %39, %40 : vector<8x16xf32>
    %cst_18 = arith.constant 0.000000e+00 : f32
    %42 = vector.broadcast %cst_18 : f32 to vector<8x1xf32>
    %43 = tpu.concatenate %42, %41 in 1 : vector<8x1xf32>, vector<8x16xf32> -> vector<8x17xf32>
    %44 = vector.extract_strided_slice %43 {offsets = [0, 0], sizes = [2, 17], strides = [1, 1]} : vector<8x17xf32> to vector<2x17xf32>
    %45 = vector.extract_strided_slice %44 {offsets = [0, 0], sizes = [2, 16], strides = [1, 1]} : vector<2x17xf32> to vector<2x16xf32>
    %46 = vector.extract_strided_slice %44 {offsets = [0, 1], sizes = [2, 16], strides = [1, 1]} : vector<2x17xf32> to vector<2x16xf32>
    %47 = tpu.concatenate %45, %46 in 0 : vector<2x16xf32>, vector<2x16xf32> -> vector<4x16xf32>
    %c0_19 = arith.constant 0 : index
    %c0_20 = arith.constant 0 : index
    %c0_21 = arith.constant 0 : index
    %48 = vector.load %arg4[%c0_19, %c0_20, %c0_21] : memref<4x2x4xbf16, #tpu.memory_space<vmem>>, vector<1x2x4xbf16>
    %49 = vector.shape_cast %48 : vector<1x2x4xbf16> to vector<2x4xbf16>
    %50 = arith.truncf %47 : vector<4x16xf32> to vector<4x16xbf16>
    %cst_22 = arith.constant dense<0.000000e+00> : vector<2x16xf32>
    %51 = tpu.matmul %49, %50, %cst_22 {dimension_numbers = #tpu.dot_dimension_numbers<[1], [0], [0], [1], [0, 0, 1, 1], [], []>} : vector<2x4xbf16>, vector<4x16xbf16>, vector<2x16xf32> -> vector<2x16xf32>
    %52 = vector.extract_strided_slice %43 {offsets = [2, 0], sizes = [2, 17], strides = [1, 1]} : vector<8x17xf32> to vector<2x17xf32>
    %53 = vector.extract_strided_slice %52 {offsets = [0, 0], sizes = [2, 16], strides = [1, 1]} : vector<2x17xf32> to vector<2x16xf32>
    %54 = vector.extract_strided_slice %52 {offsets = [0, 1], sizes = [2, 16], strides = [1, 1]} : vector<2x17xf32> to vector<2x16xf32>
    %55 = tpu.concatenate %53, %54 in 0 : vector<2x16xf32>, vector<2x16xf32> -> vector<4x16xf32>
    %c1_23 = arith.constant 1 : index
    %c0_24 = arith.constant 0 : index
    %c0_25 = arith.constant 0 : index
    %56 = vector.load %arg4[%c1_23, %c0_24, %c0_25] : memref<4x2x4xbf16, #tpu.memory_space<vmem>>, vector<1x2x4xbf16>
    %57 = vector.shape_cast %56 : vector<1x2x4xbf16> to vector<2x4xbf16>
    %58 = arith.truncf %55 : vector<4x16xf32> to vector<4x16xbf16>
    %cst_26 = arith.constant dense<0.000000e+00> : vector<2x16xf32>
    %59 = tpu.matmul %57, %58, %cst_26 {dimension_numbers = #tpu.dot_dimension_numbers<[1], [0], [0], [1], [0, 0, 1, 1], [], []>} : vector<2x4xbf16>, vector<4x16xbf16>, vector<2x16xf32> -> vector<2x16xf32>
    %60 = vector.extract_strided_slice %43 {offsets = [4, 0], sizes = [2, 17], strides = [1, 1]} : vector<8x17xf32> to vector<2x17xf32>
    %61 = vector.extract_strided_slice %60 {offsets = [0, 0], sizes = [2, 16], strides = [1, 1]} : vector<2x17xf32> to vector<2x16xf32>
    %62 = vector.extract_strided_slice %60 {offsets = [0, 1], sizes = [2, 16], strides = [1, 1]} : vector<2x17xf32> to vector<2x16xf32>
    %63 = tpu.concatenate %61, %62 in 0 : vector<2x16xf32>, vector<2x16xf32> -> vector<4x16xf32>
    %c2_27 = arith.constant 2 : index
    %c0_28 = arith.constant 0 : index
    %c0_29 = arith.constant 0 : index
    %64 = vector.load %arg4[%c2_27, %c0_28, %c0_29] : memref<4x2x4xbf16, #tpu.memory_space<vmem>>, vector<1x2x4xbf16>
    %65 = vector.shape_cast %64 : vector<1x2x4xbf16> to vector<2x4xbf16>
    %66 = arith.truncf %63 : vector<4x16xf32> to vector<4x16xbf16>
    %cst_30 = arith.constant dense<0.000000e+00> : vector<2x16xf32>
    %67 = tpu.matmul %65, %66, %cst_30 {dimension_numbers = #tpu.dot_dimension_numbers<[1], [0], [0], [1], [0, 0, 1, 1], [], []>} : vector<2x4xbf16>, vector<4x16xbf16>, vector<2x16xf32> -> vector<2x16xf32>
    %68 = vector.extract_strided_slice %43 {offsets = [6, 0], sizes = [2, 17], strides = [1, 1]} : vector<8x17xf32> to vector<2x17xf32>
    %69 = vector.extract_strided_slice %68 {offsets = [0, 0], sizes = [2, 16], strides = [1, 1]} : vector<2x17xf32> to vector<2x16xf32>
    %70 = vector.extract_strided_slice %68 {offsets = [0, 1], sizes = [2, 16], strides = [1, 1]} : vector<2x17xf32> to vector<2x16xf32>
    %71 = tpu.concatenate %69, %70 in 0 : vector<2x16xf32>, vector<2x16xf32> -> vector<4x16xf32>
    %c3_31 = arith.constant 3 : index
    %c0_32 = arith.constant 0 : index
    %c0_33 = arith.constant 0 : index
    %72 = vector.load %arg4[%c3_31, %c0_32, %c0_33] : memref<4x2x4xbf16, #tpu.memory_space<vmem>>, vector<1x2x4xbf16>
    %73 = vector.shape_cast %72 : vector<1x2x4xbf16> to vector<2x4xbf16>
    %74 = arith.truncf %71 : vector<4x16xf32> to vector<4x16xbf16>
    %cst_34 = arith.constant dense<0.000000e+00> : vector<2x16xf32>
    %75 = tpu.matmul %73, %74, %cst_34 {dimension_numbers = #tpu.dot_dimension_numbers<[1], [0], [0], [1], [0, 0, 1, 1], [], []>} : vector<2x4xbf16>, vector<4x16xbf16>, vector<2x16xf32> -> vector<2x16xf32>
    %76 = tpu.concatenate %51, %59, %67, %75 in 0 : vector<2x16xf32>, vector<2x16xf32>, vector<2x16xf32>, vector<2x16xf32> -> vector<8x16xf32>
    %c0_35 = arith.constant 0 : index
    %c0_36 = arith.constant 0 : index
    %77 = vector.load %arg5[%c0_35, %c0_36] : memref<8x1xf32, #tpu.memory_space<vmem>>, vector<8x1xf32>
    %78 = vector.broadcast %77 : vector<8x1xf32> to vector<8x16xf32>
    %79 = arith.addf %76, %78 : vector<8x16xf32>
    %cst_37 = arith.constant 0.000000e+00 : f32
    %80 = vector.broadcast %cst_37 : f32 to vector<8x16xf32>
    %81 = arith.maximumf %79, %80 : vector<8x16xf32>
    %82 = arith.addf %81, %1 : vector<8x16xf32>
    %cst_38 = arith.constant 0.000000e+00 : f32
    %83 = vector.broadcast %cst_38 : f32 to vector<8x16xf32>
    %84 = arith.maximumf %82, %83 : vector<8x16xf32>
    %cst_39 = arith.constant 0.000000e+00 : f32
    %85 = vector.broadcast %cst_39 : f32 to vector<8x2xf32>
    %86 = tpu.concatenate %85, %84 in 1 : vector<8x2xf32>, vector<8x16xf32> -> vector<8x18xf32>
    %87 = vector.extract_strided_slice %86 {offsets = [0, 0], sizes = [2, 18], strides = [1, 1]} : vector<8x18xf32> to vector<2x18xf32>
    %88 = vector.extract_strided_slice %87 {offsets = [0, 0], sizes = [2, 16], strides = [1, 1]} : vector<2x18xf32> to vector<2x16xf32>
    %89 = vector.extract_strided_slice %87 {offsets = [0, 2], sizes = [2, 16], strides = [1, 1]} : vector<2x18xf32> to vector<2x16xf32>
    %90 = tpu.concatenate %88, %89 in 0 : vector<2x16xf32>, vector<2x16xf32> -> vector<4x16xf32>
    %c0_40 = arith.constant 0 : index
    %c0_41 = arith.constant 0 : index
    %c0_42 = arith.constant 0 : index
    %91 = vector.load %arg6[%c0_40, %c0_41, %c0_42] : memref<4x4x4xbf16, #tpu.memory_space<vmem>>, vector<1x4x4xbf16>
    %92 = vector.shape_cast %91 : vector<1x4x4xbf16> to vector<4x4xbf16>
    %93 = arith.truncf %90 : vector<4x16xf32> to vector<4x16xbf16>
    %cst_43 = arith.constant dense<0.000000e+00> : vector<4x16xf32>
    %94 = tpu.matmul %92, %93, %cst_43 {dimension_numbers = #tpu.dot_dimension_numbers<[1], [0], [0], [1], [0, 0, 1, 1], [], []>} : vector<4x4xbf16>, vector<4x16xbf16>, vector<4x16xf32> -> vector<4x16xf32>
    %95 = vector.extract_strided_slice %86 {offsets = [2, 0], sizes = [2, 18], strides = [1, 1]} : vector<8x18xf32> to vector<2x18xf32>
    %96 = vector.extract_strided_slice %95 {offsets = [0, 0], sizes = [2, 16], strides = [1, 1]} : vector<2x18xf32> to vector<2x16xf32>
    %97 = vector.extract_strided_slice %95 {offsets = [0, 2], sizes = [2, 16], strides = [1, 1]} : vector<2x18xf32> to vector<2x16xf32>
    %98 = tpu.concatenate %96, %97 in 0 : vector<2x16xf32>, vector<2x16xf32> -> vector<4x16xf32>
    %c1_44 = arith.constant 1 : index
    %c0_45 = arith.constant 0 : index
    %c0_46 = arith.constant 0 : index
    %99 = vector.load %arg6[%c1_44, %c0_45, %c0_46] : memref<4x4x4xbf16, #tpu.memory_space<vmem>>, vector<1x4x4xbf16>
    %100 = vector.shape_cast %99 : vector<1x4x4xbf16> to vector<4x4xbf16>
    %101 = arith.truncf %98 : vector<4x16xf32> to vector<4x16xbf16>
    %cst_47 = arith.constant dense<0.000000e+00> : vector<4x16xf32>
    %102 = tpu.matmul %100, %101, %cst_47 {dimension_numbers = #tpu.dot_dimension_numbers<[1], [0], [0], [1], [0, 0, 1, 1], [], []>} : vector<4x4xbf16>, vector<4x16xbf16>, vector<4x16xf32> -> vector<4x16xf32>
    %103 = vector.extract_strided_slice %86 {offsets = [4, 0], sizes = [2, 18], strides = [1, 1]} : vector<8x18xf32> to vector<2x18xf32>
    %104 = vector.extract_strided_slice %103 {offsets = [0, 0], sizes = [2, 16], strides = [1, 1]} : vector<2x18xf32> to vector<2x16xf32>
    %105 = vector.extract_strided_slice %103 {offsets = [0, 2], sizes = [2, 16], strides = [1, 1]} : vector<2x18xf32> to vector<2x16xf32>
    %106 = tpu.concatenate %104, %105 in 0 : vector<2x16xf32>, vector<2x16xf32> -> vector<4x16xf32>
    %c2_48 = arith.constant 2 : index
    %c0_49 = arith.constant 0 : index
    %c0_50 = arith.constant 0 : index
    %107 = vector.load %arg6[%c2_48, %c0_49, %c0_50] : memref<4x4x4xbf16, #tpu.memory_space<vmem>>, vector<1x4x4xbf16>
    %108 = vector.shape_cast %107 : vector<1x4x4xbf16> to vector<4x4xbf16>
    %109 = arith.truncf %106 : vector<4x16xf32> to vector<4x16xbf16>
    %cst_51 = arith.constant dense<0.000000e+00> : vector<4x16xf32>
    %110 = tpu.matmul %108, %109, %cst_51 {dimension_numbers = #tpu.dot_dimension_numbers<[1], [0], [0], [1], [0, 0, 1, 1], [], []>} : vector<4x4xbf16>, vector<4x16xbf16>, vector<4x16xf32> -> vector<4x16xf32>
    %111 = vector.extract_strided_slice %86 {offsets = [6, 0], sizes = [2, 18], strides = [1, 1]} : vector<8x18xf32> to vector<2x18xf32>
    %112 = vector.extract_strided_slice %111 {offsets = [0, 0], sizes = [2, 16], strides = [1, 1]} : vector<2x18xf32> to vector<2x16xf32>
    %113 = vector.extract_strided_slice %111 {offsets = [0, 2], sizes = [2, 16], strides = [1, 1]} : vector<2x18xf32> to vector<2x16xf32>
    %114 = tpu.concatenate %112, %113 in 0 : vector<2x16xf32>, vector<2x16xf32> -> vector<4x16xf32>
    %c3_52 = arith.constant 3 : index
    %c0_53 = arith.constant 0 : index
    %c0_54 = arith.constant 0 : index
    %115 = vector.load %arg6[%c3_52, %c0_53, %c0_54] : memref<4x4x4xbf16, #tpu.memory_space<vmem>>, vector<1x4x4xbf16>
    %116 = vector.shape_cast %115 : vector<1x4x4xbf16> to vector<4x4xbf16>
    %117 = arith.truncf %114 : vector<4x16xf32> to vector<4x16xbf16>
    %cst_55 = arith.constant dense<0.000000e+00> : vector<4x16xf32>
    %118 = tpu.matmul %116, %117, %cst_55 {dimension_numbers = #tpu.dot_dimension_numbers<[1], [0], [0], [1], [0, 0, 1, 1], [], []>} : vector<4x4xbf16>, vector<4x16xbf16>, vector<4x16xf32> -> vector<4x16xf32>
    %119 = tpu.concatenate %94, %102, %110, %118 in 0 : vector<4x16xf32>, vector<4x16xf32>, vector<4x16xf32>, vector<4x16xf32> -> vector<16x16xf32>
    %c0_56 = arith.constant 0 : index
    %c0_57 = arith.constant 0 : index
    %120 = vector.load %arg7[%c0_56, %c0_57] : memref<16x1xf32, #tpu.memory_space<vmem>>, vector<16x1xf32>
    %121 = vector.broadcast %120 : vector<16x1xf32> to vector<16x16xf32>
    %122 = arith.addf %119, %121 : vector<16x16xf32>
    %cst_58 = arith.constant 0.000000e+00 : f32
    %123 = vector.broadcast %cst_58 : f32 to vector<16x16xf32>
    %124 = arith.maximumf %122, %123 : vector<16x16xf32>
    %cst_59 = arith.constant 0.000000e+00 : f32
    %125 = vector.broadcast %cst_59 : f32 to vector<16x2xf32>
    %126 = tpu.concatenate %125, %124 in 1 : vector<16x2xf32>, vector<16x16xf32> -> vector<16x18xf32>
    %127 = vector.extract_strided_slice %126 {offsets = [0, 0], sizes = [4, 18], strides = [1, 1]} : vector<16x18xf32> to vector<4x18xf32>
    %128 = vector.extract_strided_slice %127 {offsets = [0, 0], sizes = [4, 16], strides = [1, 1]} : vector<4x18xf32> to vector<4x16xf32>
    %129 = vector.extract_strided_slice %127 {offsets = [0, 2], sizes = [4, 16], strides = [1, 1]} : vector<4x18xf32> to vector<4x16xf32>
    %130 = tpu.concatenate %128, %129 in 0 : vector<4x16xf32>, vector<4x16xf32> -> vector<8x16xf32>
    %c0_60 = arith.constant 0 : index
    %c0_61 = arith.constant 0 : index
    %c0_62 = arith.constant 0 : index
    %131 = vector.load %arg8[%c0_60, %c0_61, %c0_62] : memref<4x4x8xbf16, #tpu.memory_space<vmem>>, vector<1x4x8xbf16>
    %132 = vector.shape_cast %131 : vector<1x4x8xbf16> to vector<4x8xbf16>
    %133 = arith.truncf %130 : vector<8x16xf32> to vector<8x16xbf16>
    %cst_63 = arith.constant dense<0.000000e+00> : vector<4x16xf32>
    %134 = tpu.matmul %132, %133, %cst_63 {dimension_numbers = #tpu.dot_dimension_numbers<[1], [0], [0], [1], [0, 0, 1, 1], [], []>} : vector<4x8xbf16>, vector<8x16xbf16>, vector<4x16xf32> -> vector<4x16xf32>
    %135 = vector.extract_strided_slice %126 {offsets = [4, 0], sizes = [4, 18], strides = [1, 1]} : vector<16x18xf32> to vector<4x18xf32>
    %136 = vector.extract_strided_slice %135 {offsets = [0, 0], sizes = [4, 16], strides = [1, 1]} : vector<4x18xf32> to vector<4x16xf32>
    %137 = vector.extract_strided_slice %135 {offsets = [0, 2], sizes = [4, 16], strides = [1, 1]} : vector<4x18xf32> to vector<4x16xf32>
    %138 = tpu.concatenate %136, %137 in 0 : vector<4x16xf32>, vector<4x16xf32> -> vector<8x16xf32>
    %c1_64 = arith.constant 1 : index
    %c0_65 = arith.constant 0 : index
    %c0_66 = arith.constant 0 : index
    %139 = vector.load %arg8[%c1_64, %c0_65, %c0_66] : memref<4x4x8xbf16, #tpu.memory_space<vmem>>, vector<1x4x8xbf16>
    %140 = vector.shape_cast %139 : vector<1x4x8xbf16> to vector<4x8xbf16>
    %141 = arith.truncf %138 : vector<8x16xf32> to vector<8x16xbf16>
    %cst_67 = arith.constant dense<0.000000e+00> : vector<4x16xf32>
    %142 = tpu.matmul %140, %141, %cst_67 {dimension_numbers = #tpu.dot_dimension_numbers<[1], [0], [0], [1], [0, 0, 1, 1], [], []>} : vector<4x8xbf16>, vector<8x16xbf16>, vector<4x16xf32> -> vector<4x16xf32>
    %143 = vector.extract_strided_slice %126 {offsets = [8, 0], sizes = [4, 18], strides = [1, 1]} : vector<16x18xf32> to vector<4x18xf32>
    %144 = vector.extract_strided_slice %143 {offsets = [0, 0], sizes = [4, 16], strides = [1, 1]} : vector<4x18xf32> to vector<4x16xf32>
    %145 = vector.extract_strided_slice %143 {offsets = [0, 2], sizes = [4, 16], strides = [1, 1]} : vector<4x18xf32> to vector<4x16xf32>
    %146 = tpu.concatenate %144, %145 in 0 : vector<4x16xf32>, vector<4x16xf32> -> vector<8x16xf32>
    %c2_68 = arith.constant 2 : index
    %c0_69 = arith.constant 0 : index
    %c0_70 = arith.constant 0 : index
    %147 = vector.load %arg8[%c2_68, %c0_69, %c0_70] : memref<4x4x8xbf16, #tpu.memory_space<vmem>>, vector<1x4x8xbf16>
    %148 = vector.shape_cast %147 : vector<1x4x8xbf16> to vector<4x8xbf16>
    %149 = arith.truncf %146 : vector<8x16xf32> to vector<8x16xbf16>
    %cst_71 = arith.constant dense<0.000000e+00> : vector<4x16xf32>
    %150 = tpu.matmul %148, %149, %cst_71 {dimension_numbers = #tpu.dot_dimension_numbers<[1], [0], [0], [1], [0, 0, 1, 1], [], []>} : vector<4x8xbf16>, vector<8x16xbf16>, vector<4x16xf32> -> vector<4x16xf32>
    %151 = vector.extract_strided_slice %126 {offsets = [12, 0], sizes = [4, 18], strides = [1, 1]} : vector<16x18xf32> to vector<4x18xf32>
    %152 = vector.extract_strided_slice %151 {offsets = [0, 0], sizes = [4, 16], strides = [1, 1]} : vector<4x18xf32> to vector<4x16xf32>
    %153 = vector.extract_strided_slice %151 {offsets = [0, 2], sizes = [4, 16], strides = [1, 1]} : vector<4x18xf32> to vector<4x16xf32>
    %154 = tpu.concatenate %152, %153 in 0 : vector<4x16xf32>, vector<4x16xf32> -> vector<8x16xf32>
    %c3_72 = arith.constant 3 : index
    %c0_73 = arith.constant 0 : index
    %c0_74 = arith.constant 0 : index
    %155 = vector.load %arg8[%c3_72, %c0_73, %c0_74] : memref<4x4x8xbf16, #tpu.memory_space<vmem>>, vector<1x4x8xbf16>
    %156 = vector.shape_cast %155 : vector<1x4x8xbf16> to vector<4x8xbf16>
    %157 = arith.truncf %154 : vector<8x16xf32> to vector<8x16xbf16>
    %cst_75 = arith.constant dense<0.000000e+00> : vector<4x16xf32>
    %158 = tpu.matmul %156, %157, %cst_75 {dimension_numbers = #tpu.dot_dimension_numbers<[1], [0], [0], [1], [0, 0, 1, 1], [], []>} : vector<4x8xbf16>, vector<8x16xbf16>, vector<4x16xf32> -> vector<4x16xf32>
    %159 = tpu.concatenate %134, %142, %150, %158 in 0 : vector<4x16xf32>, vector<4x16xf32>, vector<4x16xf32>, vector<4x16xf32> -> vector<16x16xf32>
    %c0_76 = arith.constant 0 : index
    %c0_77 = arith.constant 0 : index
    %160 = vector.load %arg9[%c0_76, %c0_77] : memref<16x1xf32, #tpu.memory_space<vmem>>, vector<16x1xf32>
    %161 = vector.broadcast %160 : vector<16x1xf32> to vector<16x16xf32>
    %162 = arith.addf %159, %161 : vector<16x16xf32>
    %cst_78 = arith.constant 0.000000e+00 : f32
    %163 = vector.broadcast %cst_78 : f32 to vector<16x16xf32>
    %164 = arith.maximumf %162, %163 : vector<16x16xf32>
    %c0_79 = arith.constant 0 : index
    %c0_80 = arith.constant 0 : index
    %165 = vector.load %arg10[%c0_79, %c0_80] : memref<16x8xbf16, #tpu.memory_space<vmem>>, vector<16x8xbf16>
    %166 = arith.truncf %84 : vector<8x16xf32> to vector<8x16xbf16>
    %cst_81 = arith.constant dense<0.000000e+00> : vector<16x16xf32>
    %167 = tpu.matmul %165, %166, %cst_81 {dimension_numbers = #tpu.dot_dimension_numbers<[1], [0], [0], [1], [0, 0, 1, 1], [], []>} : vector<16x8xbf16>, vector<8x16xbf16>, vector<16x16xf32> -> vector<16x16xf32>
    %c0_82 = arith.constant 0 : index
    %c0_83 = arith.constant 0 : index
    %168 = vector.load %arg11[%c0_82, %c0_83] : memref<16x1xf32, #tpu.memory_space<vmem>>, vector<16x1xf32>
    %169 = vector.broadcast %168 : vector<16x1xf32> to vector<16x16xf32>
    %170 = arith.addf %167, %169 : vector<16x16xf32>
    %171 = arith.addf %164, %170 : vector<16x16xf32>
    %cst_84 = arith.constant 0.000000e+00 : f32
    %172 = vector.broadcast %cst_84 : f32 to vector<16x16xf32>
    %173 = arith.maximumf %171, %172 : vector<16x16xf32>
    %c0_85 = arith.constant 0 : index
    %c0_86 = arith.constant 0 : index
    %c0_87 = arith.constant 0 : index
    %174 = vector.load %arg12[%c0_85, %c0_86, %c0_87] : memref<1x16x16xf32, #tpu.memory_space<vmem>>, vector<1x16x16xf32>
    %175 = vector.shape_cast %174 : vector<1x16x16xf32> to vector<16x16xf32>
    %176 = vector.shape_cast %173 : vector<16x16xf32> to vector<1x16x16xf32>
    tpu.vector_store %arg12[%c0_85, %c0_86, %c0_87], %176 {strides = array<i32>} : memref<1x16x16xf32, #tpu.memory_space<vmem>>, vector<1x16x16xf32>,
    return
  }
  func.func @transform_0(%arg0: i32) -> (i32, i32, i32) {
    %c0_i32 = arith.constant 0 : i32
    %c0_i32_0 = arith.constant 0 : i32
    %c0_i32_1 = arith.constant 0 : i32
    return %arg0, %c0_i32, %c0_i32_0 : i32, i32, i32
  }
  func.func @transform_1(%arg0: i32) -> (i32, i32, i32) {
    %c0_i32 = arith.constant 0 : i32
    %c0_i32_0 = arith.constant 0 : i32
    %c0_i32_1 = arith.constant 0 : i32
    %c0_i32_2 = arith.constant 0 : i32
    return %c0_i32, %c0_i32_0, %c0_i32_1 : i32, i32, i32
  }
  func.func @transform_2(%arg0: i32) -> (i32, i32) {
    %c0_i32 = arith.constant 0 : i32
    %c0_i32_0 = arith.constant 0 : i32
    %c0_i32_1 = arith.constant 0 : i32
    return %c0_i32, %c0_i32_0 : i32, i32
  }
  func.func @transform_3(%arg0: i32) -> (i32, i32, i32) {
    %c0_i32 = arith.constant 0 : i32
    %c0_i32_0 = arith.constant 0 : i32
    %c0_i32_1 = arith.constant 0 : i32
    %c0_i32_2 = arith.constant 0 : i32
    return %c0_i32, %c0_i32_0, %c0_i32_1 : i32, i32, i32
  }
  func.func @transform_4(%arg0: i32) -> (i32, i32) {
    %c0_i32 = arith.constant 0 : i32
    %c0_i32_0 = arith.constant 0 : i32
    %c0_i32_1 = arith.constant 0 : i32
    return %c0_i32, %c0_i32_0 : i32, i32
  }
  func.func @transform_5(%arg0: i32) -> (i32, i32, i32) {
    %c0_i32 = arith.constant 0 : i32
    %c0_i32_0 = arith.constant 0 : i32
    %c0_i32_1 = arith.constant 0 : i32
    %c0_i32_2 = arith.constant 0 : i32
    return %c0_i32, %c0_i32_0, %c0_i32_1 : i32, i32, i32
  }
  func.func @transform_6(%arg0: i32) -> (i32, i32) {
    %c0_i32 = arith.constant 0 : i32
    %c0_i32_0 = arith.constant 0 : i32
    %c0_i32_1 = arith.constant 0 : i32
    return %c0_i32, %c0_i32_0 : i32, i32
  }
  func.func @transform_7(%arg0: i32) -> (i32, i32, i32) {
    %c0_i32 = arith.constant 0 : i32
    %c0_i32_0 = arith.constant 0 : i32
    %c0_i32_1 = arith.constant 0 : i32
    %c0_i32_2 = arith.constant 0 : i32
    return %c0_i32, %c0_i32_0, %c0_i32_1 : i32, i32, i32
  }
  func.func @transform_8(%arg0: i32) -> (i32, i32) {
    %c0_i32 = arith.constant 0 : i32
    %c0_i32_0 = arith.constant 0 : i32
    %c0_i32_1 = arith.constant 0 : i32
    return %c0_i32, %c0_i32_0 : i32, i32
  }
  func.func @transform_9(%arg0: i32) -> (i32, i32) {
    %c0_i32 = arith.constant 0 : i32
    %c0_i32_0 = arith.constant 0 : i32
    %c0_i32_1 = arith.constant 0 : i32
    return %c0_i32, %c0_i32_0 : i32, i32
  }
  func.func @transform_10(%arg0: i32) -> (i32, i32) {
    %c0_i32 = arith.constant 0 : i32
    %c0_i32_0 = arith.constant 0 : i32
    %c0_i32_1 = arith.constant 0 : i32
    return %c0_i32, %c0_i32_0 : i32, i32
  }
  func.func @transform_11(%arg0: i32) -> (i32, i32, i32) {
    %c0_i32 = arith.constant 0 : i32
    %c0_i32_0 = arith.constant 0 : i32
    %c0_i32_1 = arith.constant 0 : i32
    return %arg0, %c0_i32, %c0_i32_0 : i32, i32, i32
  }
}

</mosaic_0001>

<llo_original>
// kernel: tcn_forward.1
$region0: #{tcn_forward.1}
  #allocation0 [shape = 'u32[]', space=smem, size = 0x4, offset = 0x4, fixed_abs, tag = 'smem constant byte address 0x4 - core index']
  #allocation1 [shape = 'u32[144,128]{1,0:T(1,128)}', space=vmem, size = 0x12000, scoped, tag = 'internal scratch']
  %s0 = inlined_call_operand.hbm [shape: f32[2,8,16], index: 0, kind: input, shape index: {}]
  %s1 = inlined_call_operand.hbm [shape: bf16[4,2,4], index: 1, kind: input, shape index: {}]
  %s2 = inlined_call_operand.hbm [shape: f32[8,1], index: 2, kind: input, shape index: {}]
  %s3 = inlined_call_operand.hbm [shape: bf16[4,2,4], index: 3, kind: input, shape index: {}]
  %s4 = inlined_call_operand.hbm [shape: f32[8,1], index: 4, kind: input, shape index: {}]
  %s5 = inlined_call_operand.hbm [shape: bf16[4,4,4], index: 5, kind: input, shape index: {}]
  %s6 = inlined_call_operand.hbm [shape: f32[16,1], index: 6, kind: input, shape index: {}]
  %s7 = inlined_call_operand.vmem [shape: bf16[4,4,8], index: 7, kind: input, shape index: {}]
  %s8 = inlined_call_operand.hbm [shape: f32[16,1], index: 8, kind: input, shape index: {}]
  %s9 = inlined_call_operand.vmem [shape: bf16[16,8], index: 9, kind: input, shape index: {}]
  %s10 = inlined_call_operand.vmem [shape: f32[16,1], index: 10, kind: input, shape index: {}]
  %s11 = inlined_call_operand.hbm [shape: f32[2,16,16], index: 11, kind: output, shape index: {}]
  %s12 = sld [smem:[#allocation0]]
  $region109: #{tcn_forward.1} parent=0
    _
  %s14 = ssub.s32 1, %s12
  %s15 = scalar_select 0, %s14, %s12
  $region1: #{tcn_forward.1} parent=0
    #allocation2 [shape = 'u8[8192]{0}', space=vmem, size = 0x2000, scoped, tag = 'input window, operand 0']
    #allocation3 [shape = 's32[2]{0}', space=sflag, size = 0x8, scoped, tag = 'scoped memory for tcn_forward.1']
    #allocation4 [shape = 's32[2]{0}', space=sflag, size = 0x8, scoped, tag = 'scoped memory for tcn_forward.1']
    #allocation5 [shape = 'u8[2048]{0}', space=vmem, size = 0x800, scoped, tag = 'input window, operand 1, single buffered']
    #allocation6 [shape = 's32[1]{0}', space=sflag, size = 0x4, scoped, tag = 'scoped memory for tcn_forward.1']
    #allocation7 [shape = 'u8[4096]{0}', space=vmem, size = 0x1000, scoped, tag = 'input window, operand 2, single buffered']
    #allocation8 [shape = 'u8[2048]{0}', space=vmem, size = 0x800, scoped, tag = 'input window, operand 3, single buffered']
    #allocation9 [shape = 's32[1]{0}', space=sflag, size = 0x4, scoped, tag = 'scoped memory for tcn_forward.1']
    #allocation10 [shape = 'u8[4096]{0}', space=vmem, size = 0x1000, scoped, tag = 'input window, operand 4, single buffered']
    #allocation11 [shape = 'u8[4096]{0}', space=vmem, size = 0x1000, scoped, tag = 'input window, operand 5, single buffered']
    #allocation12 [shape = 's32[1]{0}', space=sflag, size = 0x4, scoped, tag = 'scoped memory for tcn_forward.1']
    #allocation13 [shape = 'u8[8192]{0}', space=vmem, size = 0x2000, scoped, tag = 'input window, operand 6, single buffered']
    #allocation14 [shape = 'u8[8192]{0}', space=vmem, size = 0x2000, scoped, tag = 'input window, operand 8, single buffered']
    #allocation15 [shape = 's32[1]{0}', space=sflag, size = 0x4, scoped, tag = 'scoped memory for tcn_forward.1']
    #allocation16 [shape = 'u8[16384]{0}', space=vmem, size = 0x4000, scoped, tag = 'output window, operand 0']
    %16 = vsyncpa [#allocation3], 0
    %s17 = scalar_lea.sflag [#allocation3], 1
    %18 = vsyncpa %s17, 0
    %19 = vsyncpa [#allocation6], 0
    %20 = vsyncpa [#allocation9], 0
    %21 = vsyncpa [#allocation12], 0
    %22 = vsyncpa [#allocation15], 0
    %23 = vsyncpa [#allocation4], 0
    %s24 = scalar_lea.sflag [#allocation4], 1
    %25 = vsyncpa %s24, 0
    loop: start=0, step=1, limit=4
    $region2: #{tcn_forward.1} parent=1 // loop_pre_header
      _
    $region3: #{tcn_forward.1} parent=1 // loop_header
      %s27 = sphi 0, %s31
      %p28 = scmp.ge.s32.totalorder %s27, 4
      %s37 = sphi 0, %s39
      %s40 = sphi 0, %s37
      %s41 = sphi 0, %s40
      %s57 = sphi 0, %s41
      %s61 = sphi 0, %s61
      %s63 = sphi 0, %s61
      %s64 = sphi 0, %s63
      %s78 = sphi 0, %s64
      %s82 = sphi 0, %s82
      %s84 = sphi 0, %s82
      %s85 = sphi 0, %s84
      %s99 = sphi 0, %s85
      %s103 = sphi 0, %s103
      %s105 = sphi 0, %s103
      %s106 = sphi 0, %s105
      %s120 = sphi 0, %s106
      %s124 = sphi 0, %s124
      %s126 = sphi 0, %s124
      %s127 = sphi 0, %s126
      %s141 = sphi 0, %s127
      %s145 = sphi 0, %s145
      %s147 = sphi 0, %s145
      %s148 = sphi 0, %s147
      %s162 = sphi 0, %s148
      %s166 = sphi 0, %s166
      %s168 = sphi 0, %s166
      %s169 = sphi 0, %s168
      %s183 = sphi 0, %s169
      %s187 = sphi 0, %s187
      %s189 = sphi 0, %s187
      %s190 = sphi 0, %s189
      %s204 = sphi 0, %s190
      %s208 = sphi 0, %s208
      %s210 = sphi 0, %s208
      %s211 = sphi 0, %s210
      %s225 = sphi 0, %s211
      %s229 = sphi 0, %s229
      %s231 = sphi 0, %s229
      %s232 = sphi 0, %s231
      %s246 = sphi 0, %s232
      %s250 = sphi 0, %s250
      %s252 = sphi 0, %s250
      %s253 = sphi 0, %s252
      %s267 = sphi 0, %s253
      %s273 = sphi 0, %s275
      %s276 = sphi 0, %s273
      %s277 = sphi 0, %s276
      %s293 = sphi 0, %s277
    $region4: #{tcn_forward.1} parent=1 // loop_header_branch
      %30 = sbr.rel (%p28) target = $region8
    $region5: #{tcn_forward.1} parent=1 // loop_body
      %s32 = ssub.s32 %s27, 1
      %s33 = ssub.s32 %s27, 2
      %s34 = sadd.s32 %s27, 1
      %s35 = ssub.s32 %s27, %s34
      %p36 = scmp.eq.s32.totalorder %s35, 0
      %s38 = sadd.s32 %s37, 1
      %s39 = scalar_select %p36, %s37, %s38
      %p42 = pneg %p36
      %p43 = scmp.eq.s32.totalorder %s27, 1
      %p44 = por %p42, %p43
      %p45 = scmp.ne.s32.totalorder %s37, %s40
      %p46 = scmp.eq.s32.totalorder %s27, 0
      %p47 = por %p45, %p46
      %p48 = scmp.ne.s32.totalorder %s37, %s40
      %p49 = scmp.eq.s32.totalorder %s32, 1
      %p50 = por %p48, %p49
      %p51 = scmp.ne.s32.totalorder %s40, %s41
      %p52 = scmp.eq.s32.totalorder %s32, 0
      %p53 = por %p51, %p52
      %p54 = scmp.ne.s32.totalorder %s40, %s41
      %p55 = scmp.eq.s32.totalorder %s33, 1
      %p56 = por %p54, %p55
      %p58 = scmp.ne.s32.totalorder %s41, %s57
      %p59 = scmp.eq.s32.totalorder %s33, 0
      %p60 = por %p58, %p59
      %s62 = sadd.s32 %s61, 1
      %p65 = scmp.eq.s32.totalorder %s27, 1
      %p66 = scmp.ne.s32.totalorder %s61, %s63
      %p67 = scmp.eq.s32.totalorder %s27, 0
      %p68 = por %p66, %p67
      %p69 = scmp.ne.s32.totalorder %s61, %s63
      %p70 = scmp.eq.s32.totalorder %s32, 1
      %p71 = por %p69, %p70
      %p72 = scmp.ne.s32.totalorder %s63, %s64
      %p73 = scmp.eq.s32.totalorder %s32, 0
      %p74 = por %p72, %p73
      %p75 = scmp.ne.s32.totalorder %s63, %s64
      %p76 = scmp.eq.s32.totalorder %s33, 1
      %p77 = por %p75, %p76
      %p79 = scmp.ne.s32.totalorder %s64, %s78
      %p80 = scmp.eq.s32.totalorder %s33, 0
      %p81 = por %p79, %p80
      %s83 = sadd.s32 %s82, 1
      %p86 = scmp.eq.s32.totalorder %s27, 1
      %p87 = scmp.ne.s32.totalorder %s82, %s84
      %p88 = scmp.eq.s32.totalorder %s27, 0
      %p89 = por %p87, %p88
      %p90 = scmp.ne.s32.totalorder %s82, %s84
      %p91 = scmp.eq.s32.totalorder %s32, 1
      %p92 = por %p90, %p91
      %p93 = scmp.ne.s32.totalorder %s84, %s85
      %p94 = scmp.eq.s32.totalorder %s32, 0
      %p95 = por %p93, %p94
      %p96 = scmp.ne.s32.totalorder %s84, %s85
      %p97 = scmp.eq.s32.totalorder %s33, 1
      %p98 = por %p96, %p97
      %p100 = scmp.ne.s32.totalorder %s85, %s99
      %p101 = scmp.eq.s32.totalorder %s33, 0
      %p102 = por %p100, %p101
      %s104 = sadd.s32 %s103, 1
      %p107 = scmp.eq.s32.totalorder %s27, 1
      %p108 = scmp.ne.s32.totalorder %s103, %s105
      %p109 = scmp.eq.s32.totalorder %s27, 0
      %p110 = por %p108, %p109
      %p111 = scmp.ne.s32.totalorder %s103, %s105
      %p112 = scmp.eq.s32.totalorder %s32, 1
      %p113 = por %p111, %p112
      %p114 = scmp.ne.s32.totalorder %s105, %s106
      %p115 = scmp.eq.s32.totalorder %s32, 0
      %p116 = por %p114, %p115
      %p117 = scmp.ne.s32.totalorder %s105, %s106
      %p118 = scmp.eq.s32.totalorder %s33, 1
      %p119 = por %p117, %p118
      %p121 = scmp.ne.s32.totalorder %s106, %s120
      %p122 = scmp.eq.s32.totalorder %s33, 0
      %p123 = por %p121, %p122
      %s125 = sadd.s32 %s124, 1
      %p128 = scmp.eq.s32.totalorder %s27, 1
      %p129 = scmp.ne.s32.totalorder %s124, %s126
      %p130 = scmp.eq.s32.totalorder %s27, 0
      %p131 = por %p129, %p130
      %p132 = scmp.ne.s32.totalorder %s124, %s126
      %p133 = scmp.eq.s32.totalorder %s32, 1
      %p134 = por %p132, %p133
      %p135 = scmp.ne.s32.totalorder %s126, %s127
      %p136 = scmp.eq.s32.totalorder %s32, 0
      %p137 = por %p135, %p136
      %p138 = scmp.ne.s32.totalorder %s126, %s127
      %p139 = scmp.eq.s32.totalorder %s33, 1
      %p140 = por %p138, %p139
      %p142 = scmp.ne.s32.totalorder %s127, %s141
      %p143 = scmp.eq.s32.totalorder %s33, 0
      %p144 = por %p142, %p143
      %s146 = sadd.s32 %s145, 1
      %p149 = scmp.eq.s32.totalorder %s27, 1
      %p150 = scmp.ne.s32.totalorder %s145, %s147
      %p151 = scmp.eq.s32.totalorder %s27, 0
      %p152 = por %p150, %p151
      %p153 = scmp.ne.s32.totalorder %s145, %s147
      %p154 = scmp.eq.s32.totalorder %s32, 1
      %p155 = por %p153, %p154
      %p156 = scmp.ne.s32.totalorder %s147, %s148
      %p157 = scmp.eq.s32.totalorder %s32, 0
      %p158 = por %p156, %p157
      %p159 = scmp.ne.s32.totalorder %s147, %s148
      %p160 = scmp.eq.s32.totalorder %s33, 1
      %p161 = por %p159, %p160
      %p163 = scmp.ne.s32.totalorder %s148, %s162
      %p164 = scmp.eq.s32.totalorder %s33, 0
      %p165 = por %p163, %p164
      %s167 = sadd.s32 %s166, 1
      %p170 = scmp.eq.s32.totalorder %s27, 1
      %p171 = scmp.ne.s32.totalorder %s166, %s168
      %p172 = scmp.eq.s32.totalorder %s27, 0
      %p173 = por %p171, %p172
      %p174 = scmp.ne.s32.totalorder %s166, %s168
      %p175 = scmp.eq.s32.totalorder %s32, 1
      %p176 = por %p174, %p175
      %p177 = scmp.ne.s32.totalorder %s168, %s169
      %p178 = scmp.eq.s32.totalorder %s32, 0
      %p179 = por %p177, %p178
      %p180 = scmp.ne.s32.totalorder %s168, %s169
      %p181 = scmp.eq.s32.totalorder %s33, 1
      %p182 = por %p180, %p181
      %p184 = scmp.ne.s32.totalorder %s169, %s183
      %p185 = scmp.eq.s32.totalorder %s33, 0
      %p186 = por %p184, %p185
      %s188 = sadd.s32 %s187, 1
      %p191 = scmp.eq.s32.totalorder %s27, 1
      %p192 = scmp.ne.s32.totalorder %s187, %s189
      %p193 = scmp.eq.s32.totalorder %s27, 0
      %p194 = por %p192, %p193
      %p195 = scmp.ne.s32.totalorder %s187, %s189
      %p196 = scmp.eq.s32.totalorder %s32, 1
      %p197 = por %p195, %p196
      %p198 = scmp.ne.s32.totalorder %s189, %s190
      %p199 = scmp.eq.s32.totalorder %s32, 0
      %p200 = por %p198, %p199
      %p201 = scmp.ne.s32.totalorder %s189, %s190
      %p202 = scmp.eq.s32.totalorder %s33, 1
      %p203 = por %p201, %p202
      %p205 = scmp.ne.s32.totalorder %s190, %s204
      %p206 = scmp.eq.s32.totalorder %s33, 0
      %p207 = por %p205, %p206
      %s209 = sadd.s32 %s208, 1
      %p212 = scmp.eq.s32.totalorder %s27, 1
      %p213 = scmp.ne.s32.totalorder %s208, %s210
      %p214 = scmp.eq.s32.totalorder %s27, 0
      %p215 = por %p213, %p214
      %p216 = scmp.ne.s32.totalorder %s208, %s210
      %p217 = scmp.eq.s32.totalorder %s32, 1
      %p218 = por %p216, %p217
      %p219 = scmp.ne.s32.totalorder %s210, %s211
      %p220 = scmp.eq.s32.totalorder %s32, 0
      %p221 = por %p219, %p220
      %p222 = scmp.ne.s32.totalorder %s210, %s211
      %p223 = scmp.eq.s32.totalorder %s33, 1
      %p224 = por %p222, %p223
      %p226 = scmp.ne.s32.totalorder %s211, %s225
      %p227 = scmp.eq.s32.totalorder %s33, 0
      %p228 = por %p226, %p227
      %s230 = sadd.s32 %s229, 1
      %p233 = scmp.eq.s32.totalorder %s27, 1
      %p234 = scmp.ne.s32.totalorder %s229, %s231
      %p235 = scmp.eq.s32.totalorder %s27, 0
      %p236 = por %p234, %p235
      %p237 = scmp.ne.s32.totalorder %s229, %s231
      %p238 = scmp.eq.s32.totalorder %s32, 1
      %p239 = por %p237, %p238
      %p240 = scmp.ne.s32.totalorder %s231, %s232
      %p241 = scmp.eq.s32.totalorder %s32, 0
      %p242 = por %p240, %p241
      %p243 = scmp.ne.s32.totalorder %s231, %s232
      %p244 = scmp.eq.s32.totalorder %s33, 1
      %p245 = por %p243, %p244
      %p247 = scmp.ne.s32.totalorder %s232, %s246
      %p248 = scmp.eq.s32.totalorder %s33, 0
      %p249 = por %p247, %p248
      %s251 = sadd.s32 %s250, 1
      %p254 = scmp.eq.s32.totalorder %s27, 1
      %p255 = scmp.ne.s32.totalorder %s250, %s252
      %p256 = scmp.eq.s32.totalorder %s27, 0
      %p257 = por %p255, %p256
      %p258 = scmp.ne.s32.totalorder %s250, %s252
      %p259 = scmp.eq.s32.totalorder %s32, 1
      %p260 = por %p258, %p259
      %p261 = scmp.ne.s32.totalorder %s252, %s253
      %p262 = scmp.eq.s32.totalorder %s32, 0
      %p263 = por %p261, %p262
      %p264 = scmp.ne.s32.totalorder %s252, %s253
      %p265 = scmp.eq.s32.totalorder %s33, 1
      %p266 = por %p264, %p265
      %p268 = scmp.ne.s32.totalorder %s253, %s267
      %p269 = scmp.eq.s32.totalorder %s33, 0
      %p270 = por %p268, %p269
      %s271 = ssub.s32 %s27, %s34
      %p272 = scmp.eq.s32.totalorder %s271, 0
      %s274 = sadd.s32 %s273, 1
      %s275 = scalar_select %p272, %s273, %s274
      %p278 = pneg %p272
      %p279 = scmp.eq.s32.totalorder %s27, 1
      %p280 = por %p278, %p279
      %p281 = scmp.ne.s32.totalorder %s273, %s276
      %p282 = scmp.eq.s32.totalorder %s27, 0
      %p283 = por %p281, %p282
      %p284 = scmp.ne.s32.totalorder %s273, %s276
      %p285 = scmp.eq.s32.totalorder %s32, 1
      %p286 = por %p284, %p285
      %p287 = scmp.ne.s32.totalorder %s276, %s277
      %p288 = scmp.eq.s32.totalorder %s32, 0
      %p289 = por %p287, %p288
      %p290 = scmp.ne.s32.totalorder %s276, %s277
      %p291 = scmp.eq.s32.totalorder %s33, 1
      %p292 = por %p290, %p291
      %p294 = scmp.ne.s32.totalorder %s277, %s293
      %p295 = scmp.eq.s32.totalorder %s33, 0
      %p296 = por %p294, %p295
      %p297 = scmp.le.s32.totalorder 1, %s27
      %p298 = scmp.lt.s32.totalorder %s27, 3
      %p299 = pnand %p297, %p298
      %p300 = pneg %p299
      // Predicated region
      $region9: #{tcn_forward.1} parent=5 // pred_check
        _
      $region10: #{tcn_forward.1} parent=5 // pred_check_branch
        %302 = sbr.rel (%p299) target = $region12
      $region11: #{tcn_forward.1} parent=5 // pred_region
        %s303 = ssub.s32 %s27, 1
        // Predicated region
        $region13: #{tcn_forward.1} parent=11 // pred_check
          %p304 = pneg %p74
        $region14: #{tcn_forward.1} parent=11 // pred_check_branch
          %306 = sbr.rel (%p304) target = $region16
        $region15: #{tcn_forward.1} parent=11 // pred_region
          %s308 = ssub.s32 64, 64
          %309 = vsyncadd [#allocation6], %s308
          %s310 = sshll.u32 [#allocation5], 4
          %s311 = int_to_ptr.vmem [resolvable:$true] %s310
          %316 = dma.hbm_to_vmem [thread:$0]  %s1, 64, %s311, [#allocation6], 16, 16, 1
        $region16: #{tcn_forward.1} parent=11 // pred_fallthru
          _
        // Predicated region
        $region17: #{tcn_forward.1} parent=11 // pred_check
          %p317 = pneg %p95
        $region18: #{tcn_forward.1} parent=11 // pred_check_branch
          %319 = sbr.rel (%p317) target = $region20
        $region19: #{tcn_forward.1} parent=11 // pred_region
          %s321 = ssub.s32 128, 128
          %322 = vsyncadd [#allocation6], %s321
          %s324 = sshll.u32 [#allocation7], 4
          %s325 = int_to_ptr.vmem [resolvable:$true] %s324
          %327 = dma.hbm_to_vmem [thread:$0]  %s2, 128, %s325, [#allocation6]
        $region20: #{tcn_forward.1} parent=11 // pred_fallthru
          _
        // Predicated region
        $region21: #{tcn_forward.1} parent=11 // pred_check
          %p328 = pneg %p116
        $region22: #{tcn_forward.1} parent=11 // pred_check_branch
          %330 = sbr.rel (%p328) target = $region24
        $region23: #{tcn_forward.1} parent=11 // pred_region
          %s332 = ssub.s32 64, 64
          %333 = vsyncadd [#allocation9], %s332
          %s334 = sshll.u32 [#allocation8], 4
          %s335 = int_to_ptr.vmem [resolvable:$true] %s334
          %340 = dma.hbm_to_vmem [thread:$0]  %s3, 64, %s335, [#allocation9], 16, 16, 1
        $region24: #{tcn_forward.1} parent=11 // pred_fallthru
          _
        // Predicated region
        $region25: #{tcn_forward.1} parent=11 // pred_check
          %p341 = pneg %p137
        $region26: #{tcn_forward.1} parent=11 // pred_check_branch
          %343 = sbr.rel (%p341) target = $region28
        $region27: #{tcn_forward.1} parent=11 // pred_region
          %s345 = ssub.s32 128, 128
          %346 = vsyncadd [#allocation9], %s345
          %s348 = sshll.u32 [#allocation10], 4
          %s349 = int_to_ptr.vmem [resolvable:$true] %s348
          %351 = dma.hbm_to_vmem [thread:$0]  %s4, 128, %s349, [#allocation9]
        $region28: #{tcn_forward.1} parent=11 // pred_fallthru
          _
        // Predicated region
        $region29: #{tcn_forward.1} parent=11 // pred_check
          %p352 = pneg %p158
        $region30: #{tcn_forward.1} parent=11 // pred_check_branch
          %354 = sbr.rel (%p352) target = $region32
        $region31: #{tcn_forward.1} parent=11 // pred_region
          %s356 = ssub.s32 128, 128
          %357 = vsyncadd [#allocation12], %s356
          %s358 = sshll.u32 [#allocation11], 4
          %s359 = int_to_ptr.vmem [resolvable:$true] %s358
          %364 = dma.hbm_to_vmem [thread:$0]  %s5, 128, %s359, [#allocation12], 32, 32, 2
        $region32: #{tcn_forward.1} parent=11 // pred_fallthru
          _
        // Predicated region
        $region33: #{tcn_forward.1} parent=11 // pred_check
          %p365 = pneg %p179
        $region34: #{tcn_forward.1} parent=11 // pred_check_branch
          %367 = sbr.rel (%p365) target = $region36
        $region35: #{tcn_forward.1} parent=11 // pred_region
          %s369 = ssub.s32 256, 256
          %370 = vsyncadd [#allocation12], %s369
          %s371 = sshll.u32 [#allocation13], 4
          %s372 = int_to_ptr.vmem [resolvable:$true] %s371
          %377 = dma.hbm_to_vmem [thread:$0]  %s6, 256, %s372, [#allocation12], 128, 128, 8
        $region36: #{tcn_forward.1} parent=11 // pred_fallthru
          _
        // Predicated region
        $region37: #{tcn_forward.1} parent=11 // pred_check
          %p378 = pneg %p200
        $region38: #{tcn_forward.1} parent=11 // pred_check_branch
          %380 = sbr.rel (%p378) target = $region40
        $region39: #{tcn_forward.1} parent=11 // pred_region
          _
        $region40: #{tcn_forward.1} parent=11 // pred_fallthru
          _
        // Predicated region
        $region41: #{tcn_forward.1} parent=11 // pred_check
          %p381 = pneg %p221
        $region42: #{tcn_forward.1} parent=11 // pred_check_branch
          %383 = sbr.rel (%p381) target = $region44
        $region43: #{tcn_forward.1} parent=11 // pred_region
          %s385 = ssub.s32 256, 256
          %386 = vsyncadd [#allocation15], %s385
          %s387 = sshll.u32 [#allocation14], 4
          %s388 = int_to_ptr.vmem [resolvable:$true] %s387
          %393 = dma.hbm_to_vmem [thread:$0]  %s8, 256, %s388, [#allocation15], 128, 128, 8
        $region44: #{tcn_forward.1} parent=11 // pred_fallthru
          _
        // Predicated region
        $region45: #{tcn_forward.1} parent=11 // pred_check
          %p394 = pneg %p242
        $region46: #{tcn_forward.1} parent=11 // pred_check_branch
          %396 = sbr.rel (%p394) target = $region48
        $region47: #{tcn_forward.1} parent=11 // pred_region
          _
        $region48: #{tcn_forward.1} parent=11 // pred_fallthru
          _
        // Predicated region
        $region49: #{tcn_forward.1} parent=11 // pred_check
          %p397 = pneg %p263
        $region50: #{tcn_forward.1} parent=11 // pred_check_branch
          %399 = sbr.rel (%p397) target = $region52
        $region51: #{tcn_forward.1} parent=11 // pred_region
          _
        $region52: #{tcn_forward.1} parent=11 // pred_fallthru
          _
      $region12: #{tcn_forward.1} parent=5 // pred_fallthru
        _
      %p400 = scmp.lt.s32.totalorder %s27, 2
      // Predicated region
      $region53: #{tcn_forward.1} parent=5 // pred_check
        %p401 = pneg %p400
      $region54: #{tcn_forward.1} parent=5 // pred_check_branch
        %403 = sbr.rel (%p401) target = $region56
      $region55: #{tcn_forward.1} parent=5 // pred_region
        // Predicated region
        $region57: #{tcn_forward.1} parent=55 // pred_check
          %p404 = pneg %p47
        $region58: #{tcn_forward.1} parent=55 // pred_check_branch
          %406 = sbr.rel (%p404) target = $region60
        $region59: #{tcn_forward.1} parent=55 // pred_region
          %s407 = sand.u32 %s37, 1
          %s408 = scalar_lea.sflag [#allocation3], %s407
          %s409 = sand.u32 %s37, 1
          %s410 = smul.addr %s409, 8
          %s411 = scalar_lea.vmem [#allocation2], %s410
          %s413 = ssub.s32 128, 128
          %414 = vsyncadd %s408, %s413
          %s415 = smul.addr %s27, 128
          %s416 = scalar_lea.hbm %s0, %s415
          %s418 = sshll.u32 %s411, 4
          %s419 = int_to_ptr.vmem [resolvable:$true] %s418
          %421 = dma.hbm_to_vmem [thread:$0]  %s416, 128, %s419, %s408
        $region60: #{tcn_forward.1} parent=55 // pred_fallthru
          _
      $region56: #{tcn_forward.1} parent=5 // pred_fallthru
        _
      %p422 = scmp.le.s32.totalorder 1, %s27
      %p423 = scmp.lt.s32.totalorder %s27, 3
      %p424 = pnand %p422, %p423
      %p425 = pneg %p424
      // Predicated region
      $region61: #{tcn_forward.1} parent=5 // pred_check
        _
      $region62: #{tcn_forward.1} parent=5 // pred_check_branch
        %427 = sbr.rel (%p424) target = $region64
      $region63: #{tcn_forward.1} parent=5 // pred_region
        %s428 = ssub.s32 %s27, 1
        %s429 = sand.u32 %s40, 1
        %s430 = scalar_lea.sflag [#allocation3], %s429
        %s431 = sand.u32 %s40, 1
        %s432 = smul.addr %s431, 8
        %s433 = scalar_lea.vmem [#allocation2], %s432
        // Predicated region
        $region65: #{tcn_forward.1} parent=63 // pred_check
          %p434 = pneg %p53
        $region66: #{tcn_forward.1} parent=63 // pred_check_branch
          %436 = sbr.rel (%p434) target = $region68
        $region67: #{tcn_forward.1} parent=63 // pred_region
          %437 = dma.done %s430, 128
        $region68: #{tcn_forward.1} parent=63 // pred_fallthru
          _
        // Predicated region
        $region69: #{tcn_forward.1} parent=63 // pred_check
          %p438 = pneg %p74
        $region70: #{tcn_forward.1} parent=63 // pred_check_branch
          %440 = sbr.rel (%p438) target = $region72
        $region71: #{tcn_forward.1} parent=63 // pred_region
          %441 = dma.done [#allocation6], 64
        $region72: #{tcn_forward.1} parent=63 // pred_fallthru
          _
        // Predicated region
        $region73: #{tcn_forward.1} parent=63 // pred_check
          %p442 = pneg %p95
        $region74: #{tcn_forward.1} parent=63 // pred_check_branch
          %444 = sbr.rel (%p442) target = $region76
        $region75: #{tcn_forward.1} parent=63 // pred_region
          %445 = dma.done [#allocation6], 128
        $region76: #{tcn_forward.1} parent=63 // pred_fallthru
          _
        // Predicated region
        $region77: #{tcn_forward.1} parent=63 // pred_check
          %p446 = pneg %p116
        $region78: #{tcn_forward.1} parent=63 // pred_check_branch
          %448 = sbr.rel (%p446) target = $region80
        $region79: #{tcn_forward.1} parent=63 // pred_region
          %449 = dma.done [#allocation9], 64
        $region80: #{tcn_forward.1} parent=63 // pred_fallthru
          _
        // Predicated region
        $region81: #{tcn_forward.1} parent=63 // pred_check
          %p450 = pneg %p137
        $region82: #{tcn_forward.1} parent=63 // pred_check_branch
          %452 = sbr.rel (%p450) target = $region84
        $region83: #{tcn_forward.1} parent=63 // pred_region
          %453 = dma.done [#allocation9], 128
        $region84: #{tcn_forward.1} parent=63 // pred_fallthru
          _
        // Predicated region
        $region85: #{tcn_forward.1} parent=63 // pred_check
          %p454 = pneg %p158
        $region86: #{tcn_forward.1} parent=63 // pred_check_branch
          %456 = sbr.rel (%p454) target = $region88
        $region87: #{tcn_forward.1} parent=63 // pred_region
          %457 = dma.done [#allocation12], 128
        $region88: #{tcn_forward.1} parent=63 // pred_fallthru
          _
        // Predicated region
        $region89: #{tcn_forward.1} parent=63 // pred_check
          %p458 = pneg %p179
        $region90: #{tcn_forward.1} parent=63 // pred_check_branch
          %460 = sbr.rel (%p458) target = $region92
        $region91: #{tcn_forward.1} parent=63 // pred_region
          %461 = dma.done [#allocation12], 256
        $region92: #{tcn_forward.1} parent=63 // pred_fallthru
          _
        // Predicated region
        $region93: #{tcn_forward.1} parent=63 // pred_check
          %p462 = pneg %p221
        $region94: #{tcn_forward.1} parent=63 // pred_check_branch
          %464 = sbr.rel (%p462) target = $region96
        $region95: #{tcn_forward.1} parent=63 // pred_region
          %465 = dma.done [#allocation15], 256
        $region96: #{tcn_forward.1} parent=63 // pred_fallthru
          _
        %s466 = sand.u32 %s40, 1
        %s467 = scalar_lea.sflag [#allocation3], %s466
        %s468 = sand.u32 %s40, 1
        %s469 = smul.addr %s468, 8
        %s470 = scalar_lea.vmem [#allocation2], %s469
        %p471 = pneg %p53
        %p472 = pneg %p50
        %p473 = pneg %p74
        %p474 = pneg %p71
        %p475 = pneg %p95
        %p476 = pneg %p92
        %p477 = pneg %p116
        %p478 = pneg %p113
        %p479 = pneg %p137
        %p480 = pneg %p134
        %p481 = pneg %p158
        %p482 = pneg %p155
        %p483 = pneg %p179
        %p484 = pneg %p176
        %p485 = pneg %p200
        %p486 = pneg %p197
        %p487 = pneg %p221
        %p488 = pneg %p218
        %p489 = pneg %p242
        %p490 = pneg %p239
        %p491 = pneg %p263
        %p492 = pneg %p260
        %p493 = pneg %p289
        %p494 = pneg %p286
        %s495 = sand.u32 %s276, 1
        %s496 = scalar_lea.sflag [#allocation4], %s495
        %s497 = sand.u32 %s276, 1
        %s498 = smul.addr %s497, 16
        %s499 = scalar_lea.vmem [#allocation16], %s498
        %v501 = vld [vmem:[%s433] sm:$0xff]
        %503 = vrot.lane.b32.xlu0 %v501, 1
        %v504 = vpop.permute.xlu0 %503
        %vm506 = vcmask 7168
        %v507 = vsel %vm506, 0.0, %v504
        %v509 = vrot.slane %v507, 6
        %510 = vrot.lane.b32.xlu0 %v509, 127
        %v511 = vpop.permute.xlu0 %510
        %vm513 = vcmask 1041408
        %v514 = vsel %vm513, %v507, %v511
        %v515 = vld [vmem:[#allocation5] sm:$0x1]
        %v516 = vpack.c.bf16 %v514, %v514
        %vm517 = vcmask 31744
        %v519 = vsel %vm517, %v515, 0
        %v522 = vsel %vm513, %v516, 0
        %524 = vmatprep.subr.bf16.mxu0 0
        %525 = vmatpush1.bf16.msra.mxu0 %v522
        %526 = vmatprep.subr.bf16.mxu0 0
        %527 = vmatpush1.bf16.msra.mxu0 0
        %528 = vmatprep.subr.bf16.mxu0 0
        %529 = vmatpush1.bf16.msra.mxu0 0
        %530 = vmatprep.subr.bf16.mxu0 0
        %531 = vmatpush1.bf16.msra.mxu0 0
        %532 = vmatprep.subr.bf16.mxu0 0
        %533 = vmatpush1.bf16.msra.mxu0 0
        %534 = vmatprep.subr.bf16.mxu0 0
        %535 = vmatpush1.bf16.msra.mxu0 0
        %536 = vmatprep.subr.bf16.mxu0 0
        %537 = vmatpush1.bf16.msra.mxu0 0
        %538 = vmatprep.subr.bf16.mxu0 0
        %539 = vmatpush1.bf16.msra.mxu0 0
        %540 = vmatprep.subr.bf16.mxu0 0
        %541 = vmatpush1.bf16.msra.mxu0 0
        %542 = vmatprep.subr.bf16.mxu0 0
        %543 = vmatpush1.bf16.msra.mxu0 0
        %544 = vmatprep.subr.bf16.mxu0 0
        %545 = vmatpush1.bf16.msra.mxu0 0
        %546 = vmatprep.subr.bf16.mxu0 0
        %547 = vmatpush1.bf16.msra.mxu0 0
        %548 = vmatprep.subr.bf16.mxu0 0
        %549 = vmatpush1.bf16.msra.mxu0 0
        %550 = vmatprep.subr.bf16.mxu0 0
        %551 = vmatpush1.bf16.msra.mxu0 0
        %552 = vmatprep.subr.bf16.mxu0 0
        %553 = vmatpush1.bf16.msra.mxu0 0
        %554 = vmatprep.subr.bf16.mxu0 0
        %555 = vmatpush1.bf16.msra.mxu0 0
        %556 = vmatprep.mubr.bf16.mxu0 0
        %557 = vmatmul.mubr.bf16.gmra.mrb[0].mxu0 %v519
        %v558 = vpop.f32.mrb[0].mxu0
        %v559 = vadd.f32 0.0, %v558
        %v560 = vpop.f32.mrb[0].mxu0
        %v561 = vpop.f32.mrb[0].mxu0
        %v562 = vpop.f32.mrb[0].mxu0
        %563 = vdwg.mxu0
        %v564 = vrot.slane %v507, 2
        %566 = vrot.lane.b32.xlu0 %v507, 127
        %v567 = vpop.permute.xlu0 %566
        %v569 = vsel %vm513, %v564, %v567
        %s570 = scalar_lea.vmem [#allocation5], 1
        %v571 = vld [vmem:[%s570] sm:$0x1]
        %v572 = vpack.c.bf16 %v569, %v569
        %v574 = vsel %vm517, %v571, 0
        %v577 = vsel %vm513, %v572, 0
        %579 = vmatprep.subr.bf16.mxu0 0
        %580 = vmatpush1.bf16.msra.mxu0 %v577
        %581 = vmatprep.subr.bf16.mxu0 0
        %582 = vmatpush1.bf16.msra.mxu0 0
        %583 = vmatprep.subr.bf16.mxu0 0
        %584 = vmatpush1.bf16.msra.mxu0 0
        %585 = vmatprep.subr.bf16.mxu0 0
        %586 = vmatpush1.bf16.msra.mxu0 0
        %587 = vmatprep.subr.bf16.mxu0 0
        %588 = vmatpush1.bf16.msra.mxu0 0
        %589 = vmatprep.subr.bf16.mxu0 0
        %590 = vmatpush1.bf16.msra.mxu0 0
        %591 = vmatprep.subr.bf16.mxu0 0
        %592 = vmatpush1.bf16.msra.mxu0 0
        %593 = vmatprep.subr.bf16.mxu0 0
        %594 = vmatpush1.bf16.msra.mxu0 0
        %595 = vmatprep.subr.bf16.mxu0 0
        %596 = vmatpush1.bf16.msra.mxu0 0
        %597 = vmatprep.subr.bf16.mxu0 0
        %598 = vmatpush1.bf16.msra.mxu0 0
        %599 = vmatprep.subr.bf16.mxu0 0
        %600 = vmatpush1.bf16.msra.mxu0 0
        %601 = vmatprep.subr.bf16.mxu0 0
        %602 = vmatpush1.bf16.msra.mxu0 0
        %603 = vmatprep.subr.bf16.mxu0 0
        %604 = vmatpush1.bf16.msra.mxu0 0
        %605 = vmatprep.subr.bf16.mxu0 0
        %606 = vmatpush1.bf16.msra.mxu0 0
        %607 = vmatprep.subr.bf16.mxu0 0
        %608 = vmatpush1.bf16.msra.mxu0 0
        %609 = vmatprep.subr.bf16.mxu0 0
        %610 = vmatpush1.bf16.msra.mxu0 0
        %611 = vmatprep.mubr.bf16.mxu0 0
        %612 = vmatmul.mubr.bf16.gmra.mrb[0].mxu0 %v574
        %v613 = vpop.f32.mrb[0].mxu0
        %v614 = vadd.f32 0.0, %v613
        %v615 = vpop.f32.mrb[0].mxu0
        %v616 = vpop.f32.mrb[0].mxu0
        %v617 = vpop.f32.mrb[0].mxu0
        %618 = vdwg.mxu0
        %v619 = vrot.slane %v507, 4
        %621 = vrot.lane.b32.xlu0 %v564, 127
        %v622 = vpop.permute.xlu0 %621
        %v624 = vsel %vm513, %v619, %v622
        %s625 = scalar_lea.vmem [#allocation5], 2
        %v626 = vld [vmem:[%s625] sm:$0x1]
        %v627 = vpack.c.bf16 %v624, %v624
        %v629 = vsel %vm517, %v626, 0
        %v632 = vsel %vm513, %v627, 0
        %634 = vmatprep.subr.bf16.mxu0 0
        %635 = vmatpush1.bf16.msra.mxu0 %v632
        %636 = vmatprep.subr.bf16.mxu0 0
        %637 = vmatpush1.bf16.msra.mxu0 0
        %638 = vmatprep.subr.bf16.mxu0 0
        %639 = vmatpush1.bf16.msra.mxu0 0
        %640 = vmatprep.subr.bf16.mxu0 0
        %641 = vmatpush1.bf16.msra.mxu0 0
        %642 = vmatprep.subr.bf16.mxu0 0
        %643 = vmatpush1.bf16.msra.mxu0 0
        %644 = vmatprep.subr.bf16.mxu0 0
        %645 = vmatpush1.bf16.msra.mxu0 0
        %646 = vmatprep.subr.bf16.mxu0 0
        %647 = vmatpush1.bf16.msra.mxu0 0
        %648 = vmatprep.subr.bf16.mxu0 0
        %649 = vmatpush1.bf16.msra.mxu0 0
        %650 = vmatprep.subr.bf16.mxu0 0
        %651 = vmatpush1.bf16.msra.mxu0 0
        %652 = vmatprep.subr.bf16.mxu0 0
        %653 = vmatpush1.bf16.msra.mxu0 0
        %654 = vmatprep.subr.bf16.mxu0 0
        %655 = vmatpush1.bf16.msra.mxu0 0
        %656 = vmatprep.subr.bf16.mxu0 0
        %657 = vmatpush1.bf16.msra.mxu0 0
        %658 = vmatprep.subr.bf16.mxu0 0
        %659 = vmatpush1.bf16.msra.mxu0 0
        %660 = vmatprep.subr.bf16.mxu0 0
        %661 = vmatpush1.bf16.msra.mxu0 0
        %662 = vmatprep.subr.bf16.mxu0 0
        %663 = vmatpush1.bf16.msra.mxu0 0
        %664 = vmatprep.subr.bf16.mxu0 0
        %665 = vmatpush1.bf16.msra.mxu0 0
        %666 = vmatprep.mubr.bf16.mxu0 0
        %667 = vmatmul.mubr.bf16.gmra.mrb[0].mxu0 %v629
        %v668 = vpop.f32.mrb[0].mxu0
        %v669 = vadd.f32 0.0, %v668
        %v670 = vpop.f32.mrb[0].mxu0
        %v671 = vpop.f32.mrb[0].mxu0
        %v672 = vpop.f32.mrb[0].mxu0
        %673 = vdwg.mxu0
        %675 = vrot.lane.b32.xlu0 %v619, 127
        %v676 = vpop.permute.xlu0 %675
        %v678 = vsel %vm513, %v509, %v676
        %s679 = scalar_lea.vmem [#allocation5], 3
        %v680 = vld [vmem:[%s679] sm:$0x1]
        %v681 = vpack.c.bf16 %v678, %v678
        %v683 = vsel %vm517, %v680, 0
        %v686 = vsel %vm513, %v681, 0
        %688 = vmatprep.subr.bf16.mxu0 0
        %689 = vmatpush1.bf16.msra.mxu0 %v686
        %690 = vmatprep.subr.bf16.mxu0 0
        %691 = vmatpush1.bf16.msra.mxu0 0
        %692 = vmatprep.subr.bf16.mxu0 0
        %693 = vmatpush1.bf16.msra.mxu0 0
        %694 = vmatprep.subr.bf16.mxu0 0
        %695 = vmatpush1.bf16.msra.mxu0 0
        %696 = vmatprep.subr.bf16.mxu0 0
        %697 = vmatpush1.bf16.msra.mxu0 0
        %698 = vmatprep.subr.bf16.mxu0 0
        %699 = vmatpush1.bf16.msra.mxu0 0
        %700 = vmatprep.subr.bf16.mxu0 0
        %701 = vmatpush1.bf16.msra.mxu0 0
        %702 = vmatprep.subr.bf16.mxu0 0
        %703 = vmatpush1.bf16.msra.mxu0 0
        %704 = vmatprep.subr.bf16.mxu0 0
        %705 = vmatpush1.bf16.msra.mxu0 0
        %706 = vmatprep.subr.bf16.mxu0 0
        %707 = vmatpush1.bf16.msra.mxu0 0
        %708 = vmatprep.subr.bf16.mxu0 0
        %709 = vmatpush1.bf16.msra.mxu0 0
        %710 = vmatprep.subr.bf16.mxu0 0
        %711 = vmatpush1.bf16.msra.mxu0 0
        %712 = vmatprep.subr.bf16.mxu0 0
        %713 = vmatpush1.bf16.msra.mxu0 0
        %714 = vmatprep.subr.bf16.mxu0 0
        %715 = vmatpush1.bf16.msra.mxu0 0
        %716 = vmatprep.subr.bf16.mxu0 0
        %717 = vmatpush1.bf16.msra.mxu0 0
        %718 = vmatprep.subr.bf16.mxu0 0
        %719 = vmatpush1.bf16.msra.mxu0 0
        %720 = vmatprep.mubr.bf16.mxu0 0
        %721 = vmatmul.mubr.bf16.gmra.mrb[0].mxu0 %v683
        %v722 = vpop.f32.mrb[0].mxu0
        %v723 = vadd.f32 0.0, %v722
        %v724 = vpop.f32.mrb[0].mxu0
        %v725 = vpop.f32.mrb[0].mxu0
        %v726 = vpop.f32.mrb[0].mxu0
        %727 = vdwg.mxu0
        %v729 = vrot.slane %v614, 6
        %v732 = vrot.slane %v669, 4
        %v735 = vrot.slane %v723, 2
        %v737 = vsel %vm513, %v559, %v729
        %vm738 = vcmask 1043456
        %v739 = vsel %vm738, %v737, %v732
        %vm740 = vcmask 1045504
        %v741 = vsel %vm740, %v739, %v735
        %v742 = vld [vmem:[#allocation7] sm:$0xff]
        %744 = vset.pattern.permute.xlu0 0
        %745 = vperm.xlu0 %744, %v742
        %v746 = vpop.permute.xlu0 %745
        %v748 = vadd.f32 %v741, %v746
        %v749 = vmax.f32 %v748, 0.0
        %751 = vrot.lane.b32.xlu0 %v749, 1
        %v752 = vpop.permute.xlu0 %751
        %v754 = vsel %vm506, 0.0, %v752
        %v756 = vrot.slane %v754, 6
        %757 = vrot.lane.b32.xlu0 %v756, 127
        %v758 = vpop.permute.xlu0 %757
        %v760 = vsel %vm513, %v754, %v758
        %v761 = vld [vmem:[#allocation8] sm:$0x1]
        %v762 = vpack.c.bf16 %v760, %v760
        %v764 = vsel %vm517, %v761, 0
        %v767 = vsel %vm513, %v762, 0
        %769 = vmatprep.subr.bf16.mxu0 0
        %770 = vmatpush1.bf16.msra.mxu0 %v767
        %771 = vmatprep.subr.bf16.mxu0 0
        %772 = vmatpush1.bf16.msra.mxu0 0
        %773 = vmatprep.subr.bf16.mxu0 0
        %774 = vmatpush1.bf16.msra.mxu0 0
        %775 = vmatprep.subr.bf16.mxu0 0
        %776 = vmatpush1.bf16.msra.mxu0 0
        %777 = vmatprep.subr.bf16.mxu0 0
        %778 = vmatpush1.bf16.msra.mxu0 0
        %779 = vmatprep.subr.bf16.mxu0 0
        %780 = vmatpush1.bf16.msra.mxu0 0
        %781 = vmatprep.subr.bf16.mxu0 0
        %782 = vmatpush1.bf16.msra.mxu0 0
        %783 = vmatprep.subr.bf16.mxu0 0
        %784 = vmatpush1.bf16.msra.mxu0 0
        %785 = vmatprep.subr.bf16.mxu0 0
        %786 = vmatpush1.bf16.msra.mxu0 0
        %787 = vmatprep.subr.bf16.mxu0 0
        %788 = vmatpush1.bf16.msra.mxu0 0
        %789 = vmatprep.subr.bf16.mxu0 0
        %790 = vmatpush1.bf16.msra.mxu0 0
        %791 = vmatprep.subr.bf16.mxu0 0
        %792 = vmatpush1.bf16.msra.mxu0 0
        %793 = vmatprep.subr.bf16.mxu0 0
        %794 = vmatpush1.bf16.msra.mxu0 0
        %795 = vmatprep.subr.bf16.mxu0 0
        %796 = vmatpush1.bf16.msra.mxu0 0
        %797 = vmatprep.subr.bf16.mxu0 0
        %798 = vmatpush1.bf16.msra.mxu0 0
        %799 = vmatprep.subr.bf16.mxu0 0
        %800 = vmatpush1.bf16.msra.mxu0 0
        %801 = vmatprep.mubr.bf16.mxu0 0
        %802 = vmatmul.mubr.bf16.gmra.mrb[0].mxu0 %v764
        %v803 = vpop.f32.mrb[0].mxu0
        %v804 = vadd.f32 0.0, %v803
        %v805 = vpop.f32.mrb[0].mxu0
        %v806 = vpop.f32.mrb[0].mxu0
        %v807 = vpop.f32.mrb[0].mxu0
        %808 = vdwg.mxu0
        %v809 = vrot.slane %v754, 2
        %811 = vrot.lane.b32.xlu0 %v754, 127
        %v812 = vpop.permute.xlu0 %811
        %v814 = vsel %vm513, %v809, %v812
        %s815 = scalar_lea.vmem [#allocation8], 1
        %v816 = vld [vmem:[%s815] sm:$0x1]
        %v817 = vpack.c.bf16 %v814, %v814
        %v819 = vsel %vm517, %v816, 0
        %v822 = vsel %vm513, %v817, 0
        %824 = vmatprep.subr.bf16.mxu0 0
        %825 = vmatpush1.bf16.msra.mxu0 %v822
        %826 = vmatprep.subr.bf16.mxu0 0
        %827 = vmatpush1.bf16.msra.mxu0 0
        %828 = vmatprep.subr.bf16.mxu0 0
        %829 = vmatpush1.bf16.msra.mxu0 0
        %830 = vmatprep.subr.bf16.mxu0 0
        %831 = vmatpush1.bf16.msra.mxu0 0
        %832 = vmatprep.subr.bf16.mxu0 0
        %833 = vmatpush1.bf16.msra.mxu0 0
        %834 = vmatprep.subr.bf16.mxu0 0
        %835 = vmatpush1.bf16.msra.mxu0 0
        %836 = vmatprep.subr.bf16.mxu0 0
        %837 = vmatpush1.bf16.msra.mxu0 0
        %838 = vmatprep.subr.bf16.mxu0 0
        %839 = vmatpush1.bf16.msra.mxu0 0
        %840 = vmatprep.subr.bf16.mxu0 0
        %841 = vmatpush1.bf16.msra.mxu0 0
        %842 = vmatprep.subr.bf16.mxu0 0
        %843 = vmatpush1.bf16.msra.mxu0 0
        %844 = vmatprep.subr.bf16.mxu0 0
        %845 = vmatpush1.bf16.msra.mxu0 0
        %846 = vmatprep.subr.bf16.mxu0 0
        %847 = vmatpush1.bf16.msra.mxu0 0
        %848 = vmatprep.subr.bf16.mxu0 0
        %849 = vmatpush1.bf16.msra.mxu0 0
        %850 = vmatprep.subr.bf16.mxu0 0
        %851 = vmatpush1.bf16.msra.mxu0 0
        %852 = vmatprep.subr.bf16.mxu0 0
        %853 = vmatpush1.bf16.msra.mxu0 0
        %854 = vmatprep.subr.bf16.mxu0 0
        %855 = vmatpush1.bf16.msra.mxu0 0
        %856 = vmatprep.mubr.bf16.mxu0 0
        %857 = vmatmul.mubr.bf16.gmra.mrb[0].mxu0 %v819
        %v858 = vpop.f32.mrb[0].mxu0
        %v859 = vadd.f32 0.0, %v858
        %v860 = vpop.f32.mrb[0].mxu0
        %v861 = vpop.f32.mrb[0].mxu0
        %v862 = vpop.f32.mrb[0].mxu0
        %863 = vdwg.mxu0
        %v864 = vrot.slane %v754, 4
        %866 = vrot.lane.b32.xlu0 %v809, 127
        %v867 = vpop.permute.xlu0 %866
        %v869 = vsel %vm513, %v864, %v867
        %s870 = scalar_lea.vmem [#allocation8], 2
        %v871 = vld [vmem:[%s870] sm:$0x1]
        %v872 = vpack.c.bf16 %v869, %v869
        %v874 = vsel %vm517, %v871, 0
        %v877 = vsel %vm513, %v872, 0
        %879 = vmatprep.subr.bf16.mxu0 0
        %880 = vmatpush1.bf16.msra.mxu0 %v877
        %881 = vmatprep.subr.bf16.mxu0 0
        %882 = vmatpush1.bf16.msra.mxu0 0
        %883 = vmatprep.subr.bf16.mxu0 0
        %884 = vmatpush1.bf16.msra.mxu0 0
        %885 = vmatprep.subr.bf16.mxu0 0
        %886 = vmatpush1.bf16.msra.mxu0 0
        %887 = vmatprep.subr.bf16.mxu0 0
        %888 = vmatpush1.bf16.msra.mxu0 0
        %889 = vmatprep.subr.bf16.mxu0 0
        %890 = vmatpush1.bf16.msra.mxu0 0
        %891 = vmatprep.subr.bf16.mxu0 0
        %892 = vmatpush1.bf16.msra.mxu0 0
        %893 = vmatprep.subr.bf16.mxu0 0
        %894 = vmatpush1.bf16.msra.mxu0 0
        %895 = vmatprep.subr.bf16.mxu0 0
        %896 = vmatpush1.bf16.msra.mxu0 0
        %897 = vmatprep.subr.bf16.mxu0 0
        %898 = vmatpush1.bf16.msra.mxu0 0
        %899 = vmatprep.subr.bf16.mxu0 0
        %900 = vmatpush1.bf16.msra.mxu0 0
        %901 = vmatprep.subr.bf16.mxu0 0
        %902 = vmatpush1.bf16.msra.mxu0 0
        %903 = vmatprep.subr.bf16.mxu0 0
        %904 = vmatpush1.bf16.msra.mxu0 0
        %905 = vmatprep.subr.bf16.mxu0 0
        %906 = vmatpush1.bf16.msra.mxu0 0
        %907 = vmatprep.subr.bf16.mxu0 0
        %908 = vmatpush1.bf16.msra.mxu0 0
        %909 = vmatprep.subr.bf16.mxu0 0
        %910 = vmatpush1.bf16.msra.mxu0 0
        %911 = vmatprep.mubr.bf16.mxu0 0
        %912 = vmatmul.mubr.bf16.gmra.mrb[0].mxu0 %v874
        %v913 = vpop.f32.mrb[0].mxu0
        %v914 = vadd.f32 0.0, %v913
        %v915 = vpop.f32.mrb[0].mxu0
        %v916 = vpop.f32.mrb[0].mxu0
        %v917 = vpop.f32.mrb[0].mxu0
        %918 = vdwg.mxu0
        %920 = vrot.lane.b32.xlu0 %v864, 127
        %v921 = vpop.permute.xlu0 %920
        %v923 = vsel %vm513, %v756, %v921
        %s924 = scalar_lea.vmem [#allocation8], 3
        %v925 = vld [vmem:[%s924] sm:$0x1]
        %v926 = vpack.c.bf16 %v923, %v923
        %v928 = vsel %vm517, %v925, 0
        %v931 = vsel %vm513, %v926, 0
        %933 = vmatprep.subr.bf16.mxu0 0
        %934 = vmatpush1.bf16.msra.mxu0 %v931
        %935 = vmatprep.subr.bf16.mxu0 0
        %936 = vmatpush1.bf16.msra.mxu0 0
        %937 = vmatprep.subr.bf16.mxu0 0
        %938 = vmatpush1.bf16.msra.mxu0 0
        %939 = vmatprep.subr.bf16.mxu0 0
        %940 = vmatpush1.bf16.msra.mxu0 0
        %941 = vmatprep.subr.bf16.mxu0 0
        %942 = vmatpush1.bf16.msra.mxu0 0
        %943 = vmatprep.subr.bf16.mxu0 0
        %944 = vmatpush1.bf16.msra.mxu0 0
        %945 = vmatprep.subr.bf16.mxu0 0
        %946 = vmatpush1.bf16.msra.mxu0 0
        %947 = vmatprep.subr.bf16.mxu0 0
        %948 = vmatpush1.bf16.msra.mxu0 0
        %949 = vmatprep.subr.bf16.mxu0 0
        %950 = vmatpush1.bf16.msra.mxu0 0
        %951 = vmatprep.subr.bf16.mxu0 0
        %952 = vmatpush1.bf16.msra.mxu0 0
        %953 = vmatprep.subr.bf16.mxu0 0
        %954 = vmatpush1.bf16.msra.mxu0 0
        %955 = vmatprep.subr.bf16.mxu0 0
        %956 = vmatpush1.bf16.msra.mxu0 0
        %957 = vmatprep.subr.bf16.mxu0 0
        %958 = vmatpush1.bf16.msra.mxu0 0
        %959 = vmatprep.subr.bf16.mxu0 0
        %960 = vmatpush1.bf16.msra.mxu0 0
        %961 = vmatprep.subr.bf16.mxu0 0
        %962 = vmatpush1.bf16.msra.mxu0 0
        %963 = vmatprep.subr.bf16.mxu0 0
        %964 = vmatpush1.bf16.msra.mxu0 0
        %965 = vmatprep.mubr.bf16.mxu0 0
        %966 = vmatmul.mubr.bf16.gmra.mrb[0].mxu0 %v928
        %v967 = vpop.f32.mrb[0].mxu0
        %v968 = vadd.f32 0.0, %v967
        %v969 = vpop.f32.mrb[0].mxu0
        %v970 = vpop.f32.mrb[0].mxu0
        %v971 = vpop.f32.mrb[0].mxu0
        %972 = vdwg.mxu0
        %v974 = vrot.slane %v859, 6
        %v977 = vrot.slane %v914, 4
        %v980 = vrot.slane %v968, 2
        %v982 = vsel %vm513, %v804, %v974
        %v983 = vsel %vm738, %v982, %v977
        %v984 = vsel %vm740, %v983, %v980
        %v985 = vld [vmem:[#allocation10] sm:$0xff]
        %987 = vset.pattern.permute.xlu0 0
        %988 = vperm.xlu0 %987, %v985
        %v989 = vpop.permute.xlu0 %988
        %v991 = vadd.f32 %v984, %v989
        %v992 = vmax.f32 %v991, 0.0
        %v993 = vadd.f32 %v992, %v501
        %v994 = vmax.f32 %v993, 0.0
        %996 = vrot.lane.b32.xlu0 %v994, 2
        %v997 = vpop.permute.xlu0 %996
        %vm999 = vcmask 15360
        %v1000 = vsel %vm999, 0.0, %v997
        %v1002 = vrot.slane %v1000, 6
        %1003 = vrot.lane.b32.xlu0 %v1002, 126
        %v1004 = vpop.permute.xlu0 %1003
        %v1006 = vsel %vm513, %v1000, %v1004
        %v1007 = vld [vmem:[#allocation11] sm:$0x3]
        %v1008 = vpack.c.bf16 %v1006, %v1006
        %v1010 = vsel %vm517, %v1007, 0
        %v1013 = vsel %vm513, %v1008, 0
        %1015 = vmatprep.subr.bf16.mxu0 0
        %1016 = vmatpush1.bf16.msra.mxu0 %v1013
        %1017 = vmatprep.subr.bf16.mxu0 0
        %1018 = vmatpush1.bf16.msra.mxu0 0
        %1019 = vmatprep.subr.bf16.mxu0 0
        %1020 = vmatpush1.bf16.msra.mxu0 0
        %1021 = vmatprep.subr.bf16.mxu0 0
        %1022 = vmatpush1.bf16.msra.mxu0 0
        %1023 = vmatprep.subr.bf16.mxu0 0
        %1024 = vmatpush1.bf16.msra.mxu0 0
        %1025 = vmatprep.subr.bf16.mxu0 0
        %1026 = vmatpush1.bf16.msra.mxu0 0
        %1027 = vmatprep.subr.bf16.mxu0 0
        %1028 = vmatpush1.bf16.msra.mxu0 0
        %1029 = vmatprep.subr.bf16.mxu0 0
        %1030 = vmatpush1.bf16.msra.mxu0 0
        %1031 = vmatprep.subr.bf16.mxu0 0
        %1032 = vmatpush1.bf16.msra.mxu0 0
        %1033 = vmatprep.subr.bf16.mxu0 0
        %1034 = vmatpush1.bf16.msra.mxu0 0
        %1035 = vmatprep.subr.bf16.mxu0 0
        %1036 = vmatpush1.bf16.msra.mxu0 0
        %1037 = vmatprep.subr.bf16.mxu0 0
        %1038 = vmatpush1.bf16.msra.mxu0 0
        %1039 = vmatprep.subr.bf16.mxu0 0
        %1040 = vmatpush1.bf16.msra.mxu0 0
        %1041 = vmatprep.subr.bf16.mxu0 0
        %1042 = vmatpush1.bf16.msra.mxu0 0
        %1043 = vmatprep.subr.bf16.mxu0 0
        %1044 = vmatpush1.bf16.msra.mxu0 0
        %1045 = vmatprep.subr.bf16.mxu0 0
        %1046 = vmatpush1.bf16.msra.mxu0 0
        %1047 = vmatprep.mubr.bf16.mxu0 0
        %1048 = vmatmul.mubr.bf16.gmra.mrb[0].mxu0 %v1010
        %v1049 = vpop.f32.mrb[0].mxu0
        %v1050 = vadd.f32 0.0, %v1049
        %v1051 = vpop.f32.mrb[0].mxu0
        %v1052 = vpop.f32.mrb[0].mxu0
        %v1053 = vpop.f32.mrb[0].mxu0
        %1054 = vdwg.mxu0
        %v1055 = vrot.slane %v1000, 2
        %1057 = vrot.lane.b32.xlu0 %v1000, 126
        %v1058 = vpop.permute.xlu0 %1057
        %v1060 = vsel %vm513, %v1055, %v1058
        %s1061 = scalar_lea.vmem [#allocation11], 2
        %v1062 = vld [vmem:[%s1061] sm:$0x3]
        %v1063 = vpack.c.bf16 %v1060, %v1060
        %v1065 = vsel %vm517, %v1062, 0
        %v1068 = vsel %vm513, %v1063, 0
        %1070 = vmatprep.subr.bf16.mxu0 0
        %1071 = vmatpush1.bf16.msra.mxu0 %v1068
        %1072 = vmatprep.subr.bf16.mxu0 0
        %1073 = vmatpush1.bf16.msra.mxu0 0
        %1074 = vmatprep.subr.bf16.mxu0 0
        %1075 = vmatpush1.bf16.msra.mxu0 0
        %1076 = vmatprep.subr.bf16.mxu0 0
        %1077 = vmatpush1.bf16.msra.mxu0 0
        %1078 = vmatprep.subr.bf16.mxu0 0
        %1079 = vmatpush1.bf16.msra.mxu0 0
        %1080 = vmatprep.subr.bf16.mxu0 0
        %1081 = vmatpush1.bf16.msra.mxu0 0
        %1082 = vmatprep.subr.bf16.mxu0 0
        %1083 = vmatpush1.bf16.msra.mxu0 0
        %1084 = vmatprep.subr.bf16.mxu0 0
        %1085 = vmatpush1.bf16.msra.mxu0 0
        %1086 = vmatprep.subr.bf16.mxu0 0
        %1087 = vmatpush1.bf16.msra.mxu0 0
        %1088 = vmatprep.subr.bf16.mxu0 0
        %1089 = vmatpush1.bf16.msra.mxu0 0
        %1090 = vmatprep.subr.bf16.mxu0 0
        %1091 = vmatpush1.bf16.msra.mxu0 0
        %1092 = vmatprep.subr.bf16.mxu0 0
        %1093 = vmatpush1.bf16.msra.mxu0 0
        %1094 = vmatprep.subr.bf16.mxu0 0
        %1095 = vmatpush1.bf16.msra.mxu0 0
        %1096 = vmatprep.subr.bf16.mxu0 0
        %1097 = vmatpush1.bf16.msra.mxu0 0
        %1098 = vmatprep.subr.bf16.mxu0 0
        %1099 = vmatpush1.bf16.msra.mxu0 0
        %1100 = vmatprep.subr.bf16.mxu0 0
        %1101 = vmatpush1.bf16.msra.mxu0 0
        %1102 = vmatprep.mubr.bf16.mxu0 0
        %1103 = vmatmul.mubr.bf16.gmra.mrb[0].mxu0 %v1065
        %v1104 = vpop.f32.mrb[0].mxu0
        %v1105 = vadd.f32 0.0, %v1104
        %v1106 = vpop.f32.mrb[0].mxu0
        %v1107 = vpop.f32.mrb[0].mxu0
        %v1108 = vpop.f32.mrb[0].mxu0
        %1109 = vdwg.mxu0
        %v1110 = vrot.slane %v1000, 4
        %1112 = vrot.lane.b32.xlu0 %v1055, 126
        %v1113 = vpop.permute.xlu0 %1112
        %v1115 = vsel %vm513, %v1110, %v1113
        %s1116 = scalar_lea.vmem [#allocation11], 4
        %v1117 = vld [vmem:[%s1116] sm:$0x3]
        %v1118 = vpack.c.bf16 %v1115, %v1115
        %v1120 = vsel %vm517, %v1117, 0
        %v1123 = vsel %vm513, %v1118, 0
        %1125 = vmatprep.subr.bf16.mxu0 0
        %1126 = vmatpush1.bf16.msra.mxu0 %v1123
        %1127 = vmatprep.subr.bf16.mxu0 0
        %1128 = vmatpush1.bf16.msra.mxu0 0
        %1129 = vmatprep.subr.bf16.mxu0 0
        %1130 = vmatpush1.bf16.msra.mxu0 0
        %1131 = vmatprep.subr.bf16.mxu0 0
        %1132 = vmatpush1.bf16.msra.mxu0 0
        %1133 = vmatprep.subr.bf16.mxu0 0
        %1134 = vmatpush1.bf16.msra.mxu0 0
        %1135 = vmatprep.subr.bf16.mxu0 0
        %1136 = vmatpush1.bf16.msra.mxu0 0
        %1137 = vmatprep.subr.bf16.mxu0 0
        %1138 = vmatpush1.bf16.msra.mxu0 0
        %1139 = vmatprep.subr.bf16.mxu0 0
        %1140 = vmatpush1.bf16.msra.mxu0 0
        %1141 = vmatprep.subr.bf16.mxu0 0
        %1142 = vmatpush1.bf16.msra.mxu0 0
        %1143 = vmatprep.subr.bf16.mxu0 0
        %1144 = vmatpush1.bf16.msra.mxu0 0
        %1145 = vmatprep.subr.bf16.mxu0 0
        %1146 = vmatpush1.bf16.msra.mxu0 0
        %1147 = vmatprep.subr.bf16.mxu0 0
        %1148 = vmatpush1.bf16.msra.mxu0 0
        %1149 = vmatprep.subr.bf16.mxu0 0
        %1150 = vmatpush1.bf16.msra.mxu0 0
        %1151 = vmatprep.subr.bf16.mxu0 0
        %1152 = vmatpush1.bf16.msra.mxu0 0
        %1153 = vmatprep.subr.bf16.mxu0 0
        %1154 = vmatpush1.bf16.msra.mxu0 0
        %1155 = vmatprep.subr.bf16.mxu0 0
        %1156 = vmatpush1.bf16.msra.mxu0 0
        %1157 = vmatprep.mubr.bf16.mxu0 0
        %1158 = vmatmul.mubr.bf16.gmra.mrb[0].mxu0 %v1120
        %v1159 = vpop.f32.mrb[0].mxu0
        %v1160 = vadd.f32 0.0, %v1159
        %v1161 = vpop.f32.mrb[0].mxu0
        %v1162 = vpop.f32.mrb[0].mxu0
        %v1163 = vpop.f32.mrb[0].mxu0
        %1164 = vdwg.mxu0
        %1166 = vrot.lane.b32.xlu0 %v1110, 126
        %v1167 = vpop.permute.xlu0 %1166
        %v1169 = vsel %vm513, %v1002, %v1167
        %s1170 = scalar_lea.vmem [#allocation11], 6
        %v1171 = vld [vmem:[%s1170] sm:$0x3]
        %v1172 = vpack.c.bf16 %v1169, %v1169
        %v1174 = vsel %vm517, %v1171, 0
        %v1177 = vsel %vm513, %v1172, 0
        %1179 = vmatprep.subr.bf16.mxu0 0
        %1180 = vmatpush1.bf16.msra.mxu0 %v1177
        %1181 = vmatprep.subr.bf16.mxu0 0
        %1182 = vmatpush1.bf16.msra.mxu0 0
        %1183 = vmatprep.subr.bf16.mxu0 0
        %1184 = vmatpush1.bf16.msra.mxu0 0
        %1185 = vmatprep.subr.bf16.mxu0 0
        %1186 = vmatpush1.bf16.msra.mxu0 0
        %1187 = vmatprep.subr.bf16.mxu0 0
        %1188 = vmatpush1.bf16.msra.mxu0 0
        %1189 = vmatprep.subr.bf16.mxu0 0
        %1190 = vmatpush1.bf16.msra.mxu0 0
        %1191 = vmatprep.subr.bf16.mxu0 0
        %1192 = vmatpush1.bf16.msra.mxu0 0
        %1193 = vmatprep.subr.bf16.mxu0 0
        %1194 = vmatpush1.bf16.msra.mxu0 0
        %1195 = vmatprep.subr.bf16.mxu0 0
        %1196 = vmatpush1.bf16.msra.mxu0 0
        %1197 = vmatprep.subr.bf16.mxu0 0
        %1198 = vmatpush1.bf16.msra.mxu0 0
        %1199 = vmatprep.subr.bf16.mxu0 0
        %1200 = vmatpush1.bf16.msra.mxu0 0
        %1201 = vmatprep.subr.bf16.mxu0 0
        %1202 = vmatpush1.bf16.msra.mxu0 0
        %1203 = vmatprep.subr.bf16.mxu0 0
        %1204 = vmatpush1.bf16.msra.mxu0 0
        %1205 = vmatprep.subr.bf16.mxu0 0
        %1206 = vmatpush1.bf16.msra.mxu0 0
        %1207 = vmatprep.subr.bf16.mxu0 0
        %1208 = vmatpush1.bf16.msra.mxu0 0
        %1209 = vmatprep.subr.bf16.mxu0 0
        %1210 = vmatpush1.bf16.msra.mxu0 0
        %1211 = vmatprep.mubr.bf16.mxu0 0
        %1212 = vmatmul.mubr.bf16.gmra.mrb[0].mxu0 %v1174
        %v1213 = vpop.f32.mrb[0].mxu0
        %v1214 = vadd.f32 0.0, %v1213
        %v1215 = vpop.f32.mrb[0].mxu0
        %v1216 = vpop.f32.mrb[0].mxu0
        %v1217 = vpop.f32.mrb[0].mxu0
        %1218 = vdwg.mxu0
        %v1220 = vrot.slane %v1105, 4
        %v1223 = vrot.slane %v1214, 4
        %v1225 = vsel %vm738, %v1050, %v1220
        %v1226 = vsel %vm738, %v1160, %v1223
        %v1227 = vld [vmem:[#allocation13] sm:$0xff]
        %v1228 = vld [vmem:[#allocation13 + $0x8] sm:$0xff]
        %1230 = vset.pattern.permute.xlu0 0
        %1231 = vperm.xlu0 %1230, %v1227
        %v1232 = vpop.permute.xlu0 %1231
        %1235 = vset.pattern.permute.xlu0 0
        %1236 = vperm.xlu0 %1235, %v1228
        %v1237 = vpop.permute.xlu0 %1236
        %v1239 = vadd.f32 %v1225, %v1232
        %v1240 = vadd.f32 %v1226, %v1237
        %v1241 = vmax.f32 %v1239, 0.0
        %v1242 = vmax.f32 %v1240, 0.0
        %1245 = vrot.lane.b32.xlu0 %v1241, 2
        %v1246 = vpop.permute.xlu0 %1245
        %1247 = vrot.lane.b32.xlu0 %v1242, 2
        %v1248 = vpop.permute.xlu0 %1247
        %v1251 = vsel %vm999, 0.0, %v1246
        %v1252 = vsel %vm999, 0.0, %v1248
        %v1254 = vrot.slane %v1251, 4
        %1255 = vrot.lane.b32.xlu0 %v1254, 126
        %v1256 = vpop.permute.xlu0 %1255
        %v1258 = vsel %vm738, %v1251, %v1256
        %v1259 = vld [vmem:[%s7] sm:$0x3]
        %v1260 = vpack.c.bf16 %v1258, %v1258
        %vm1261 = vcmask 64512
        %v1263 = vsel %vm1261, %v1259, 0
        %v1266 = vsel %vm738, %v1260, 0
        %1268 = vmatprep.subr.bf16.mxu0 0
        %1269 = vmatpush1.bf16.msra.mxu0 %v1266
        %1270 = vmatprep.subr.bf16.mxu0 0
        %1271 = vmatpush1.bf16.msra.mxu0 0
        %1272 = vmatprep.subr.bf16.mxu0 0
        %1273 = vmatpush1.bf16.msra.mxu0 0
        %1274 = vmatprep.subr.bf16.mxu0 0
        %1275 = vmatpush1.bf16.msra.mxu0 0
        %1276 = vmatprep.subr.bf16.mxu0 0
        %1277 = vmatpush1.bf16.msra.mxu0 0
        %1278 = vmatprep.subr.bf16.mxu0 0
        %1279 = vmatpush1.bf16.msra.mxu0 0
        %1280 = vmatprep.subr.bf16.mxu0 0
        %1281 = vmatpush1.bf16.msra.mxu0 0
        %1282 = vmatprep.subr.bf16.mxu0 0
        %1283 = vmatpush1.bf16.msra.mxu0 0
        %1284 = vmatprep.subr.bf16.mxu0 0
        %1285 = vmatpush1.bf16.msra.mxu0 0
        %1286 = vmatprep.subr.bf16.mxu0 0
        %1287 = vmatpush1.bf16.msra.mxu0 0
        %1288 = vmatprep.subr.bf16.mxu0 0
        %1289 = vmatpush1.bf16.msra.mxu0 0
        %1290 = vmatprep.subr.bf16.mxu0 0
        %1291 = vmatpush1.bf16.msra.mxu0 0
        %1292 = vmatprep.subr.bf16.mxu0 0
        %1293 = vmatpush1.bf16.msra.mxu0 0
        %1294 = vmatprep.subr.bf16.mxu0 0
        %1295 = vmatpush1.bf16.msra.mxu0 0
        %1296 = vmatprep.subr.bf16.mxu0 0
        %1297 = vmatpush1.bf16.msra.mxu0 0
        %1298 = vmatprep.subr.bf16.mxu0 0
        %1299 = vmatpush1.bf16.msra.mxu0 0
        %1300 = vmatprep.mubr.bf16.mxu0 0
        %1301 = vmatmul.mubr.bf16.gmra.mrb[0].mxu0 %v1263
        %v1302 = vpop.f32.mrb[0].mxu0
        %v1303 = vadd.f32 0.0, %v1302
        %v1304 = vpop.f32.mrb[0].mxu0
        %v1305 = vpop.f32.mrb[0].mxu0
        %v1306 = vpop.f32.mrb[0].mxu0
        %1307 = vdwg.mxu0
        %1309 = vrot.lane.b32.xlu0 %v1251, 126
        %v1310 = vpop.permute.xlu0 %1309
        %v1312 = vsel %vm738, %v1254, %v1310
        %s1313 = scalar_lea.vmem %s7, 2
        %v1314 = vld [vmem:[%s1313] sm:$0x3]
        %v1315 = vpack.c.bf16 %v1312, %v1312
        %v1317 = vsel %vm1261, %v1314, 0
        %v1320 = vsel %vm738, %v1315, 0
        %1322 = vmatprep.subr.bf16.mxu0 0
        %1323 = vmatpush1.bf16.msra.mxu0 %v1320
        %1324 = vmatprep.subr.bf16.mxu0 0
        %1325 = vmatpush1.bf16.msra.mxu0 0
        %1326 = vmatprep.subr.bf16.mxu0 0
        %1327 = vmatpush1.bf16.msra.mxu0 0
        %1328 = vmatprep.subr.bf16.mxu0 0
        %1329 = vmatpush1.bf16.msra.mxu0 0
        %1330 = vmatprep.subr.bf16.mxu0 0
        %1331 = vmatpush1.bf16.msra.mxu0 0
        %1332 = vmatprep.subr.bf16.mxu0 0
        %1333 = vmatpush1.bf16.msra.mxu0 0
        %1334 = vmatprep.subr.bf16.mxu0 0
        %1335 = vmatpush1.bf16.msra.mxu0 0
        %1336 = vmatprep.subr.bf16.mxu0 0
        %1337 = vmatpush1.bf16.msra.mxu0 0
        %1338 = vmatprep.subr.bf16.mxu0 0
        %1339 = vmatpush1.bf16.msra.mxu0 0
        %1340 = vmatprep.subr.bf16.mxu0 0
        %1341 = vmatpush1.bf16.msra.mxu0 0
        %1342 = vmatprep.subr.bf16.mxu0 0
        %1343 = vmatpush1.bf16.msra.mxu0 0
        %1344 = vmatprep.subr.bf16.mxu0 0
        %1345 = vmatpush1.bf16.msra.mxu0 0
        %1346 = vmatprep.subr.bf16.mxu0 0
        %1347 = vmatpush1.bf16.msra.mxu0 0
        %1348 = vmatprep.subr.bf16.mxu0 0
        %1349 = vmatpush1.bf16.msra.mxu0 0
        %1350 = vmatprep.subr.bf16.mxu0 0
        %1351 = vmatpush1.bf16.msra.mxu0 0
        %1352 = vmatprep.subr.bf16.mxu0 0
        %1353 = vmatpush1.bf16.msra.mxu0 0
        %1354 = vmatprep.mubr.bf16.mxu0 0
        %1355 = vmatmul.mubr.bf16.gmra.mrb[0].mxu0 %v1317
        %v1356 = vpop.f32.mrb[0].mxu0
        %v1357 = vadd.f32 0.0, %v1356
        %v1358 = vpop.f32.mrb[0].mxu0
        %v1359 = vpop.f32.mrb[0].mxu0
        %v1360 = vpop.f32.mrb[0].mxu0
        %1361 = vdwg.mxu0
        %v1363 = vrot.slane %v1252, 4
        %1364 = vrot.lane.b32.xlu0 %v1363, 126
        %v1365 = vpop.permute.xlu0 %1364
        %v1367 = vsel %vm738, %v1252, %v1365
        %s1368 = scalar_lea.vmem %s7, 4
        %v1369 = vld [vmem:[%s1368] sm:$0x3]
        %v1370 = vpack.c.bf16 %v1367, %v1367
        %v1372 = vsel %vm1261, %v1369, 0
        %v1375 = vsel %vm738, %v1370, 0
        %1377 = vmatprep.subr.bf16.mxu0 0
        %1378 = vmatpush1.bf16.msra.mxu0 %v1375
        %1379 = vmatprep.subr.bf16.mxu0 0
        %1380 = vmatpush1.bf16.msra.mxu0 0
        %1381 = vmatprep.subr.bf16.mxu0 0
        %1382 = vmatpush1.bf16.msra.mxu0 0
        %1383 = vmatprep.subr.bf16.mxu0 0
        %1384 = vmatpush1.bf16.msra.mxu0 0
        %1385 = vmatprep.subr.bf16.mxu0 0
        %1386 = vmatpush1.bf16.msra.mxu0 0
        %1387 = vmatprep.subr.bf16.mxu0 0
        %1388 = vmatpush1.bf16.msra.mxu0 0
        %1389 = vmatprep.subr.bf16.mxu0 0
        %1390 = vmatpush1.bf16.msra.mxu0 0
        %1391 = vmatprep.subr.bf16.mxu0 0
        %1392 = vmatpush1.bf16.msra.mxu0 0
        %1393 = vmatprep.subr.bf16.mxu0 0
        %1394 = vmatpush1.bf16.msra.mxu0 0
        %1395 = vmatprep.subr.bf16.mxu0 0
        %1396 = vmatpush1.bf16.msra.mxu0 0
        %1397 = vmatprep.subr.bf16.mxu0 0
        %1398 = vmatpush1.bf16.msra.mxu0 0
        %1399 = vmatprep.subr.bf16.mxu0 0
        %1400 = vmatpush1.bf16.msra.mxu0 0
        %1401 = vmatprep.subr.bf16.mxu0 0
        %1402 = vmatpush1.bf16.msra.mxu0 0
        %1403 = vmatprep.subr.bf16.mxu0 0
        %1404 = vmatpush1.bf16.msra.mxu0 0
        %1405 = vmatprep.subr.bf16.mxu0 0
        %1406 = vmatpush1.bf16.msra.mxu0 0
        %1407 = vmatprep.subr.bf16.mxu0 0
        %1408 = vmatpush1.bf16.msra.mxu0 0
        %1409 = vmatprep.mubr.bf16.mxu0 0
        %1410 = vmatmul.mubr.bf16.gmra.mrb[0].mxu0 %v1372
        %v1411 = vpop.f32.mrb[0].mxu0
        %v1412 = vadd.f32 0.0, %v1411
        %v1413 = vpop.f32.mrb[0].mxu0
        %v1414 = vpop.f32.mrb[0].mxu0
        %v1415 = vpop.f32.mrb[0].mxu0
        %1416 = vdwg.mxu0
        %1418 = vrot.lane.b32.xlu0 %v1252, 126
        %v1419 = vpop.permute.xlu0 %1418
        %v1421 = vsel %vm738, %v1363, %v1419
        %s1422 = scalar_lea.vmem %s7, 6
        %v1423 = vld [vmem:[%s1422] sm:$0x3]
        %v1424 = vpack.c.bf16 %v1421, %v1421
        %v1426 = vsel %vm1261, %v1423, 0
        %v1429 = vsel %vm738, %v1424, 0
        %1431 = vmatprep.subr.bf16.mxu0 0
        %1432 = vmatpush1.bf16.msra.mxu0 %v1429
        %1433 = vmatprep.subr.bf16.mxu0 0
        %1434 = vmatpush1.bf16.msra.mxu0 0
        %1435 = vmatprep.subr.bf16.mxu0 0
        %1436 = vmatpush1.bf16.msra.mxu0 0
        %1437 = vmatprep.subr.bf16.mxu0 0
        %1438 = vmatpush1.bf16.msra.mxu0 0
        %1439 = vmatprep.subr.bf16.mxu0 0
        %1440 = vmatpush1.bf16.msra.mxu0 0
        %1441 = vmatprep.subr.bf16.mxu0 0
        %1442 = vmatpush1.bf16.msra.mxu0 0
        %1443 = vmatprep.subr.bf16.mxu0 0
        %1444 = vmatpush1.bf16.msra.mxu0 0
        %1445 = vmatprep.subr.bf16.mxu0 0
        %1446 = vmatpush1.bf16.msra.mxu0 0
        %1447 = vmatprep.subr.bf16.mxu0 0
        %1448 = vmatpush1.bf16.msra.mxu0 0
        %1449 = vmatprep.subr.bf16.mxu0 0
        %1450 = vmatpush1.bf16.msra.mxu0 0
        %1451 = vmatprep.subr.bf16.mxu0 0
        %1452 = vmatpush1.bf16.msra.mxu0 0
        %1453 = vmatprep.subr.bf16.mxu0 0
        %1454 = vmatpush1.bf16.msra.mxu0 0
        %1455 = vmatprep.subr.bf16.mxu0 0
        %1456 = vmatpush1.bf16.msra.mxu0 0
        %1457 = vmatprep.subr.bf16.mxu0 0
        %1458 = vmatpush1.bf16.msra.mxu0 0
        %1459 = vmatprep.subr.bf16.mxu0 0
        %1460 = vmatpush1.bf16.msra.mxu0 0
        %1461 = vmatprep.subr.bf16.mxu0 0
        %1462 = vmatpush1.bf16.msra.mxu0 0
        %1463 = vmatprep.mubr.bf16.mxu0 0
        %1464 = vmatmul.mubr.bf16.gmra.mrb[0].mxu0 %v1426
        %v1465 = vpop.f32.mrb[0].mxu0
        %v1466 = vadd.f32 0.0, %v1465
        %v1467 = vpop.f32.mrb[0].mxu0
        %v1468 = vpop.f32.mrb[0].mxu0
        %v1469 = vpop.f32.mrb[0].mxu0
        %1470 = vdwg.mxu0
        %v1472 = vrot.slane %v1357, 4
        %v1475 = vrot.slane %v1466, 4
        %v1477 = vsel %vm738, %v1303, %v1472
        %v1478 = vsel %vm738, %v1412, %v1475
        %v1479 = vld [vmem:[#allocation14] sm:$0xff]
        %v1480 = vld [vmem:[#allocation14 + $0x8] sm:$0xff]
        %1482 = vset.pattern.permute.xlu0 0
        %1483 = vperm.xlu0 %1482, %v1479
        %v1484 = vpop.permute.xlu0 %1483
        %1487 = vset.pattern.permute.xlu0 0
        %1488 = vperm.xlu0 %1487, %v1480
        %v1489 = vpop.permute.xlu0 %1488
        %v1491 = vadd.f32 %v1477, %v1484
        %v1492 = vadd.f32 %v1478, %v1489
        %v1493 = vmax.f32 %v1491, 0.0
        %v1494 = vmax.f32 %v1492, 0.0
        %v1495 = vld [vmem:[%s9] sm:$0xf]
        %v1496 = vld [vmem:[%s9 + $0x4] sm:$0xf]
        %v1497 = vpack.c.bf16 %v994, %v994
        %v1498 = vld [vmem:[%s10] sm:$0xff]
        %v1499 = vld [vmem:[%s10 + $0x8] sm:$0xff]
        %1501 = vset.pattern.permute.xlu0 0
        %1502 = vperm.xlu0 %1501, %v1498
        %v1503 = vpop.permute.xlu0 %1502
        %1506 = vset.pattern.permute.xlu0 0
        %1507 = vperm.xlu0 %1506, %v1499
        %v1508 = vpop.permute.xlu0 %1507
        %v1512 = vunpack.c.l.b16 %v1495
        %v1513 = vunpack.c.l.b16 %v1496
        %v1514 = vpack.c.b16 %v1513, %v1512
        %v1516 = vsel %vm1261, %v1514, 0
        %v1519 = vsel %vm738, %v1497, 0
        %1521 = vmatprep.subr.bf16.mxu0 0
        %1522 = vmatpush1.bf16.msra.mxu0 %v1519
        %1523 = vmatprep.subr.bf16.mxu0 0
        %1524 = vmatpush1.bf16.msra.mxu0 0
        %1525 = vmatprep.subr.bf16.mxu0 0
        %1526 = vmatpush1.bf16.msra.mxu0 0
        %1527 = vmatprep.subr.bf16.mxu0 0
        %1528 = vmatpush1.bf16.msra.mxu0 0
        %1529 = vmatprep.subr.bf16.mxu0 0
        %1530 = vmatpush1.bf16.msra.mxu0 0
        %1531 = vmatprep.subr.bf16.mxu0 0
        %1532 = vmatpush1.bf16.msra.mxu0 0
        %1533 = vmatprep.subr.bf16.mxu0 0
        %1534 = vmatpush1.bf16.msra.mxu0 0
        %1535 = vmatprep.subr.bf16.mxu0 0
        %1536 = vmatpush1.bf16.msra.mxu0 0
        %1537 = vmatprep.subr.bf16.mxu0 0
        %1538 = vmatpush1.bf16.msra.mxu0 0
        %1539 = vmatprep.subr.bf16.mxu0 0
        %1540 = vmatpush1.bf16.msra.mxu0 0
        %1541 = vmatprep.subr.bf16.mxu0 0
        %1542 = vmatpush1.bf16.msra.mxu0 0
        %1543 = vmatprep.subr.bf16.mxu0 0
        %1544 = vmatpush1.bf16.msra.mxu0 0
        %1545 = vmatprep.subr.bf16.mxu0 0
        %1546 = vmatpush1.bf16.msra.mxu0 0
        %1547 = vmatprep.subr.bf16.mxu0 0
        %1548 = vmatpush1.bf16.msra.mxu0 0
        %1549 = vmatprep.subr.bf16.mxu0 0
        %1550 = vmatpush1.bf16.msra.mxu0 0
        %1551 = vmatprep.subr.bf16.mxu0 0
        %1552 = vmatpush1.bf16.msra.mxu0 0
        %1553 = vmatprep.mubr.bf16.mxu0 0
        %1554 = vmatmul.mubr.bf16.gmra.mrb[0].mxu0 %v1516
        %v1555 = vpop.f32.mrb[0].mxu0
        %v1556 = vadd.f32 %v1503, %v1555
        %v1557 = vpop.f32.mrb[0].mxu0
        %v1558 = vpop.f32.mrb[0].mxu0
        %v1559 = vadd.f32 %v1508, %v1558
        %v1560 = vpop.f32.mrb[0].mxu0
        %1561 = vdwg.mxu0
        %v1562 = vadd.f32 %v1493, %v1556
        %v1563 = vadd.f32 %v1494, %v1559
        %v1564 = vmax.f32 %v1562, 0.0
        %v1565 = vmax.f32 %v1563, 0.0
        %vm1566 = vcmask 130048
        %1567 = vst.msk [vmem:[%s499] sm:$0xff] %vm1566, %v1564
        %1568 = vst.msk [vmem:[%s499 + $0x8] sm:$0xff] %vm1566, %v1565
        %s1569 = sand.u32 %s276, 1
        %s1570 = scalar_lea.sflag [#allocation4], %s1569
        %s1571 = sand.u32 %s276, 1
        %s1572 = smul.addr %s1571, 16
        %s1573 = scalar_lea.vmem [#allocation16], %s1572
        // Predicated region
        $region97: #{tcn_forward.1} parent=63 // pred_check
          %p1574 = pneg %p286
        $region98: #{tcn_forward.1} parent=63 // pred_check_branch
          %1576 = sbr.rel (%p1574) target = $region100
        $region99: #{tcn_forward.1} parent=63 // pred_region
          %s1578 = ssub.s32 256, 256
          %1579 = vsyncadd %s1570, %s1578
          %s1580 = smul.addr %s32, 2
          %s1581 = smul.addr %s1580, 128
          %s1582 = scalar_lea.hbm %s11, %s1581
          %s1583 = sshll.u32 %s1573, 4
          %s1584 = int_to_ptr.vmem [resolvable:$true] %s1583
          %1589 = dma.vmem_to_hbm [thread:$0]  %s1584, 256, %s1582, %s1570, 128, 128, 8
        $region100: #{tcn_forward.1} parent=63 // pred_fallthru
          _
      $region64: #{tcn_forward.1} parent=5 // pred_fallthru
        _
      %p1590 = scmp.le.s32.totalorder 2, %s27
      // Predicated region
      $region101: #{tcn_forward.1} parent=5 // pred_check
        %p1591 = pneg %p1590
      $region102: #{tcn_forward.1} parent=5 // pred_check_branch
        %1593 = sbr.rel (%p1591) target = $region104
      $region103: #{tcn_forward.1} parent=5 // pred_region
        %s1594 = ssub.s32 %s27, 2
        // Predicated region
        $region105: #{tcn_forward.1} parent=103 // pred_check
          %p1595 = pneg %p292
        $region106: #{tcn_forward.1} parent=103 // pred_check_branch
          %1597 = sbr.rel (%p1595) target = $region108
        $region107: #{tcn_forward.1} parent=103 // pred_region
          %s1598 = sand.u32 %s277, 1
          %s1599 = scalar_lea.sflag [#allocation4], %s1598
          %s1600 = sand.u32 %s277, 1
          %s1601 = smul.addr %s1600, 16
          %s1602 = scalar_lea.vmem [#allocation16], %s1601
          %1603 = dma.done %s1599, 256
        $region108: #{tcn_forward.1} parent=103 // pred_fallthru
          _
      $region104: #{tcn_forward.1} parent=5 // pred_fallthru
        _
    $region6: #{tcn_forward.1} parent=1 // loop_footer
      %s31 = sadd.s32 1, %s27
    $region7: #{tcn_forward.1} parent=1 // loop_footer_branch
      %26 = sbr.rel target = $region3
    $region8: #{tcn_forward.1} parent=1 // loop_exit
      _
    %1604 = vsyncpa [#allocation3], 1
    %s1605 = scalar_lea.sflag [#allocation3], 1
    %1606 = vsyncpa %s1605, 1
    %1607 = vsyncpa [#allocation6], 1
    %1608 = vsyncpa [#allocation9], 1
    %1609 = vsyncpa [#allocation12], 1
    %1610 = vsyncpa [#allocation15], 1
    %1611 = vsyncpa [#allocation4], 1
    %s1612 = scalar_lea.sflag [#allocation4], 1
    %1613 = vsyncpa %s1612, 1

</llo_original>
